<compile_context>
chip_gen: v7x
topology: tpu7x:2x2x1
jax: 0.10.0
libtpu: 0.0.40
codegen_flags: <defaults>
</compile_context>

<pallas_src>
import numpy as np
import jax
import jax.numpy as jnp
from jax.experimental import pallas as pl
from jax.experimental.pallas import tpu as pltpu

f32 = jnp.float32
bf16 = jnp.bfloat16


def _gelu_erf(x):
    # exact (erf-based) GELU, matching torch.nn.functional.gelu default
    return 0.5 * x * (1.0 + jax.lax.erf(x * 0.7071067811865475))


def _gelu_tanh(x):
    # tanh-approx GELU (lowers to the EUP transcendental slot)
    c = 0.7978845608028654
    return 0.5 * x * (1.0 + jnp.tanh(c * (x + 0.044715 * x * x * x)))


def _round_up(v, m):
    return (v + m - 1) // m * m


def _vmem_capacity_bytes():
    try:
        return int(pltpu.get_tpu_info().vmem_capacity_bytes)
    except Exception:
        return 64 * 1024 * 1024  # conservative (v7x per-TC) fallback


def _pick_block_b(B, N, D, Fp, H, budget_bytes):
    """Largest divisor of B (<= 8, lane-aligned) whose VMEM estimate fits."""
    const = 8 * N * Fp + 2 * D * D + 4 * D * H * Fp + (2 << 20)
    divs = [d for d in range(1, B + 1)
            if B % d == 0 and (d == B or (d * D) % 128 == 0)]
    fitting = [d for d in divs
               if d <= 8 and
               const + 44 * N * D * d + 4 * H * d * d * D + 560 * d * D
               <= budget_bytes]
    return max(fitting) if fitting else min(divs)


def multi_head_spectral_attention(x, params, *, num_heads, block_b=None):
    """Forward pass.  x: (B, N, D) float32 -> (B, N, D) float32."""
    B, N, D = x.shape
    H = num_heads
    hd = D // H
    F = N // 2 + 1
    Fp = _round_up(F, 8)            # frequency bins padded to sublane multiple
    FpH = H * Fp
    pad = Fp - F

    cap = _vmem_capacity_bytes()
    vmem_limit = min(100 * 1024 * 1024, int(cap * 0.8))
    budget = max(vmem_limit - (6 << 20), 8 << 20)

    # direct (un-folded) path: blocks index (B, N, D) directly, no host transposes
    direct = (D % 128 == 0) and (D >= 256)
    if direct:
        Bt = 1
    elif block_b is not None:
        Bt = block_b
        assert B % Bt == 0 and (Bt == B or (Bt * D) % 128 == 0)
    else:
        Bt = _pick_block_b(B, N, D, Fp, H, budget)

    # ---------------- host-side parameter prep ----------------
    gamma_t = jnp.tile(params["gamma"].reshape(1, D).astype(f32), (1, Bt))
    beta_t = jnp.tile(params["beta"].reshape(1, D).astype(f32), (1, Bt))
    w1 = params["w1"].astype(bf16)                                    # (D, D)
    b1 = params["b1"].reshape(1, D).astype(f32)

    # w2 columns are (h, f, {scale, bias}); regroup to [scale | bias] blocks with
    # per-head frequency padding so column index = h*Fp + f (lane-dense, aligned).
    w2r = params["w2"].reshape(D, H, F, 2).astype(f32)
    w2s = jnp.pad(w2r[..., 0], ((0, 0), (0, 0), (0, pad))).reshape(D, FpH)
    w2b = jnp.pad(w2r[..., 1], ((0, 0), (0, 0), (0, pad))).reshape(D, FpH)
    w2sb = jnp.concatenate([w2s, w2b], axis=1).astype(bf16)           # (D, 2*FpH)
    b2r = params["b2"].reshape(H, F, 2).astype(f32)
    b2s = jnp.pad(b2r[..., 0], ((0, 0), (0, pad))).reshape(1, FpH)
    b2b = jnp.pad(b2r[..., 1], ((0, 0), (0, pad))).reshape(1, FpH)
    b2sb = jnp.concatenate([b2s, b2b], axis=1)                        # (1, 2*FpH)

    base_f = jnp.pad(params["base_filter"].reshape(H, F).astype(f32),
                     ((0, 0), (0, pad))).reshape(1, FpH)              # (1, FpH)
    base_b = jnp.pad(params["base_bias"].reshape(H, F).astype(f32),
                     ((0, 0), (0, pad))).reshape(1, FpH)

    # ---- ortho real-DFT matrices, frequency axis padded to Fp (zero rows/cols) ----
    k = np.arange(F)[:, None]
    n = np.arange(N)[None, :]
    ang = 2.0 * np.pi * k * n / N
    cc_np = np.zeros((2 * Fp, N), np.float32)
    cc_np[:F, :] = np.cos(ang) / np.sqrt(N)                           # Re rows
    cc_np[Fp:Fp + F, :] = -np.sin(ang) / np.sqrt(N)                   # Im rows
    cc = jnp.asarray(cc_np, dtype=bf16)                               # (2*Fp, N)

    wgt = np.full((F,), 2.0)
    wgt[0] = 1.0
    if N % 2 == 0:
        wgt[-1] = 1.0
    ang2 = 2.0 * np.pi * np.arange(N)[:, None] * np.arange(F)[None, :] / N
    icc_np = np.zeros((N, 2 * Fp), np.float32)
    icc_np[:, :F] = wgt[None, :] * np.cos(ang2) / np.sqrt(N)
    icc_np[:, Fp:Fp + F] = -wgt[None, :] * np.sin(ang2) / np.sqrt(N)
    icc = jnp.asarray(icc_np, dtype=bf16)                             # (N, 2*Fp)

    # ---- replication / block-pooling constants (depend on Bt, all tiny) ----
    rep_np = np.zeros((H * Bt, Bt * D), np.float32)
    for h in range(H):
        for b in range(Bt):
            rep_np[h * Bt + b, b * D + h * hd: b * D + (h + 1) * hd] = 1.0
    rep = jnp.asarray(rep_np)                                         # (H*Bt, Bt*D)

    s_np = np.zeros((Bt * D, Bt), np.float32)
    r_np = np.zeros((Bt, Bt * D), np.float32)
    for b in range(Bt):
        s_np[b * D:(b + 1) * D, b] = 1.0 / D
        r_np[b, b * D:(b + 1) * D] = 1.0
    s_m = jnp.asarray(s_np)                                           # (Bt*D, Bt)
    r_m = jnp.asarray(r_np)                                           # (Bt, Bt*D)

    weights = [gamma_t, beta_t, w1, b1, w2sb, b2sb, base_f, base_b,
               cc, icc, rep, s_m, r_m]

    # ---------------- kernel body (works on one (N, Bt*D) slab) ----------------
    def spectral_body(xt, g_ref, be_ref, w1_ref, b1_ref, w2_ref, b2_ref,
                      bf_ref, bb_ref, cc_ref, icc_ref, rep_ref, s_ref, r_ref):
        # ---- LayerNorm via block-pooling matmuls (no per-batch slicing) ----
        mu = jnp.dot(jnp.dot(xt, s_ref[...], preferred_element_type=f32),
                     r_ref[...], preferred_element_type=f32)          # (N, Bt*D)
        xc = xt - mu
        var = jnp.dot(jnp.dot(xc * xc, s_ref[...], preferred_element_type=f32),
                      r_ref[...], preferred_element_type=f32)
        xn = xc * jax.lax.rsqrt(var + 1e-5) * g_ref[...] + be_ref[...]
        xn_b = xn.astype(bf16)

        # ---- mean-pooled context + adaptive MLP (tiny, lane-dense) ----
        colmean = jnp.mean(xn, axis=0, keepdims=True)                 # (1, Bt*D)
        if Bt > 1:
            ctx = jnp.concatenate(
                [colmean[:, b * D:(b + 1) * D] for b in range(Bt)], axis=0)
        else:
            ctx = colmean                                             # (Bt, D)
        hmid = _gelu_erf(jnp.dot(ctx.astype(bf16), w1_ref[...],
                                 preferred_element_type=f32) + b1_ref[...])
        a = jnp.dot(hmid.astype(bf16), w2_ref[...],
                    preferred_element_type=f32) + b2_ref[...]         # (Bt, 2*FpH)

        # ---- effective filter / bias (lane-dense), expanded on the MXU ----
        eff_s = bf_ref[...] * (1.0 + a[:, :FpH])                      # (Bt, FpH)
        eff_b = bb_ref[...] + a[:, FpH:]
        esT = eff_s.T                                                 # (FpH, Bt)
        ebT = eff_b.T
        if H > 1:                                                     # (Fp, H*Bt)
            es_hb = jnp.concatenate(
                [esT[h * Fp:(h + 1) * Fp, :] for h in range(H)], axis=1)
            eb_hb = jnp.concatenate(
                [ebT[h * Fp:(h + 1) * Fp, :] for h in range(H)], axis=1)
        else:
            es_hb, eb_hb = esT, ebT
        filt = jnp.dot(es_hb, rep_ref[...], preferred_element_type=f32)   # (Fp, Bt*D)
        fbias = jnp.dot(eb_hb, rep_ref[...], preferred_element_type=f32)

        # ---- fused rfft (ortho): one (2*Fp, N) @ (N, Bt*D) matmul ----
        spec = jnp.dot(cc_ref[...], xn_b, preferred_element_type=f32)  # (2*Fp, Bt*D)
        re = spec[:Fp, :]                                              # aligned slices
        im = spec[Fp:, :]

        # ---- spectral modulation (real filter & bias -> bias shifts Re only) ----
        re_m = re * filt + fbias
        im_m = im * filt

        # ---- complex activation: z * gelu(|z|) / (|z| + 1e-6) ----
        mag = jnp.sqrt(re_m * re_m + im_m * im_m)
        scale = _gelu_tanh(mag) * pl.reciprocal(mag + 1e-6, approx=True)
        snl = jnp.concatenate([(re_m * scale).astype(bf16),
                               (im_m * scale).astype(bf16)], axis=0)   # (2*Fp, Bt*D)

        # ---- fused irfft (ortho): one (N, 2*Fp) @ (2*Fp, Bt*D) matmul ----
        return jnp.dot(icc_ref[...], snl, preferred_element_type=f32)  # (N, Bt*D)

    def kernel_folded(x_ref, g_ref, be_ref, w1_ref, b1_ref, w2_ref, b2_ref,
                      bf_ref, bb_ref, cc_ref, icc_ref, rep_ref, s_ref, r_ref,
                      o_ref):
        x_filt = spectral_body(x_ref[...], g_ref, be_ref, w1_ref, b1_ref,
                               w2_ref, b2_ref, bf_ref, bb_ref, cc_ref, icc_ref,
                               rep_ref, s_ref, r_ref)
        o_ref[...] = x_ref[...] + x_filt          # residual re-read at point of use

    def kernel_direct(x_ref, g_ref, be_ref, w1_ref, b1_ref, w2_ref, b2_ref,
                      bf_ref, bb_ref, cc_ref, icc_ref, rep_ref, s_ref, r_ref,
                      o_ref):
        x_filt = spectral_body(x_ref[0], g_ref, be_ref, w1_ref, b1_ref,
                               w2_ref, b2_ref, bf_ref, bb_ref, cc_ref, icc_ref,
                               rep_ref, s_ref, r_ref)
        o_ref[0] = x_ref[0] + x_filt

    # ---------------- launch ----------------
    def launch(single_buffer):
        def w_spec(a):
            if single_buffer:
                return pl.BlockSpec(a.shape, lambda i: (0, 0),
                                    pipeline_mode=pl.Buffered(1))
            return pl.BlockSpec(a.shape, lambda i: (0, 0))

        cparams = pltpu.CompilerParams(
            dimension_semantics=("parallel",),
            vmem_limit_bytes=vmem_limit)

        if direct:
            return pl.pallas_call(
                kernel_direct,
                out_shape=jax.ShapeDtypeStruct((B, N, D), f32),
                grid=(B,),
                in_specs=[pl.BlockSpec((1, N, D), lambda i: (i, 0, 0))]
                         + [w_spec(a) for a in weights],
                out_specs=pl.BlockSpec((1, N, D), lambda i: (i, 0, 0)),
                compiler_params=cparams,
            )(x.astype(f32), *weights)

        xt = jnp.transpose(x.astype(f32), (1, 0, 2)).reshape(N, B * D)
        out = pl.pallas_call(
            kernel_folded,
            out_shape=jax.ShapeDtypeStruct((N, B * D), f32),
            grid=(B // Bt,),
            in_specs=[pl.BlockSpec((N, Bt * D), lambda i: (0, i))]
                     + [w_spec(a) for a in weights],
            out_specs=pl.BlockSpec((N, Bt * D), lambda i: (0, i)),
            compiler_params=cparams,
        )(xt, *weights)
        return out.reshape(N, B, D).transpose(1, 0, 2)

    try:
        return launch(True)
    except Exception:
        # pipeline_mode=pl.Buffered(1) not supported by this JAX version -> retry
        return launch(False)


def _reference(x, params, *, num_heads):
    """Plain-JAX reference matching the PyTorch forward (eval mode)."""
    B, N, D = x.shape
    hd = D // num_heads
    F = N // 2 + 1
    mean = jnp.mean(x, axis=-1, keepdims=True)
    var = jnp.mean((x - mean) ** 2, axis=-1, keepdims=True)
    x_norm = (x - mean) / jnp.sqrt(var + 1e-5) * params["gamma"] + params["beta"]
    x_heads = x_norm.reshape(B, N, num_heads, hd).transpose(0, 2, 1, 3)
    Ffft = jnp.fft.rfft(x_heads, axis=2, norm="ortho")
    ctx = jnp.mean(x_norm, axis=1)
    h = _gelu_erf(ctx @ params["w1"] + params["b1"])
    ap = (h @ params["w2"] + params["b2"]).reshape(B, num_heads, F, 2)
    a_scale, a_bias = ap[..., 0:1], ap[..., 1:2]
    eff_f = params["base_filter"][None] * (1.0 + a_scale)
    eff_b = params["base_bias"][None] + a_bias
    Fmod = Ffft * eff_f + eff_b
    mag = jnp.abs(Fmod)
    scale = _gelu_erf(mag) / (mag + 1e-6)
    Fnl = Fmod * scale
    x_filt = jnp.fft.irfft(Fnl, n=N, axis=2, norm="ortho")
    x_filt = x_filt.transpose(0, 2, 1, 3).reshape(B, N, D)
    return x + x_filt


if __name__ == "__main__":
    B, N, D, H = 2, 8, 32, 4           # batch, seq_len, embed_dim, num_heads
    F = N // 2 + 1
    key = jax.random.PRNGKey(0)
    kx, k1, k2, k3, k4 = jax.random.split(key, 5)
    x = jax.random.normal(kx, (B, N, D), jnp.float32)
    params = {
        "gamma": jnp.ones((D,), jnp.float32),
        "beta": jnp.zeros((D,), jnp.float32),
        "w1": jax.random.normal(k1, (D, D), jnp.float32) * 0.05,
        "b1": jax.random.normal(k2, (D,), jnp.float32) * 0.05,
        "w2": jax.random.normal(k3, (D, H * F * 2), jnp.float32) * 0.05,
        "b2": jax.random.normal(k4, (H * F * 2,), jnp.float32) * 0.05,
        "base_filter": jnp.ones((H, F, 1), jnp.float32),
        "base_bias": jnp.full((H, F, 1), -0.1, jnp.float32),
    }

    out = multi_head_spectral_attention(x, params, num_heads=H)
    out = jax.block_until_ready(out)

    ref = _reference(x, params, num_heads=H)
    assert out.shape == (B, N, D)
    assert bool(jnp.all(jnp.isfinite(out)))
    err = float(jnp.max(jnp.abs(out - ref)))
    assert err < 5e-2, f"max abs err {err}"
    print("KERNEL_OK")
</pallas_src>

<mosaic_0001>
module attributes {stable_mosaic.version = 11 : i64} {
  func.func @kernel_folded(%arg0: i32, %arg1: memref<8x64xf32, #tpu.memory_space<vmem>>, %arg2: memref<1x64xf32, #tpu.memory_space<vmem>>, %arg3: memref<1x64xf32, #tpu.memory_space<vmem>>, %arg4: memref<32x32xbf16, #tpu.memory_space<vmem>>, %arg5: memref<1x32xf32, #tpu.memory_space<vmem>>, %arg6: memref<32x64xbf16, #tpu.memory_space<vmem>>, %arg7: memref<1x64xf32, #tpu.memory_space<vmem>>, %arg8: memref<1x32xf32, #tpu.memory_space<vmem>>, %arg9: memref<1x32xf32, #tpu.memory_space<vmem>>, %arg10: memref<16x8xbf16, #tpu.memory_space<vmem>>, %arg11: memref<8x16xbf16, #tpu.memory_space<vmem>>, %arg12: memref<8x64xf32, #tpu.memory_space<vmem>>, %arg13: memref<64x2xf32, #tpu.memory_space<vmem>>, %arg14: memref<2x64xf32, #tpu.memory_space<vmem>>, %arg15: memref<8x64xf32, #tpu.memory_space<vmem>>) attributes {dimension_semantics = [#tpu.dimension_semantics<parallel>], iteration_bounds = array<i64: 1>, scalar_prefetch = 0 : i64, scratch_operands = 0 : i64, tpu.core_type = #tpu.core_type<tc>, window_params = [{transform_indices = @transform_0, window_bounds = array<i64: 8, 64>}, {pipeline_mode = #tpu.pipeline_mode<synchronous>, transform_indices = @transform_1, window_bounds = array<i64: 1, 64>}, {pipeline_mode = #tpu.pipeline_mode<synchronous>, transform_indices = @transform_2, window_bounds = array<i64: 1, 64>}, {pipeline_mode = #tpu.pipeline_mode<synchronous>, transform_indices = @transform_3, window_bounds = array<i64: 32, 32>}, {pipeline_mode = #tpu.pipeline_mode<synchronous>, transform_indices = @transform_4, window_bounds = array<i64: 1, 32>}, {pipeline_mode = #tpu.pipeline_mode<synchronous>, transform_indices = @transform_5, window_bounds = array<i64: 32, 64>}, {pipeline_mode = #tpu.pipeline_mode<synchronous>, transform_indices = @transform_6, window_bounds = array<i64: 1, 64>}, {pipeline_mode = #tpu.pipeline_mode<synchronous>, transform_indices = @transform_7, window_bounds = array<i64: 1, 32>}, {pipeline_mode = #tpu.pipeline_mode<synchronous>, transform_indices = @transform_8, window_bounds = array<i64: 1, 32>}, {pipeline_mode = #tpu.pipeline_mode<synchronous>, transform_indices = @transform_9, window_bounds = array<i64: 16, 8>}, {pipeline_mode = #tpu.pipeline_mode<synchronous>, transform_indices = @transform_10, window_bounds = array<i64: 8, 16>}, {pipeline_mode = #tpu.pipeline_mode<synchronous>, transform_indices = @transform_11, window_bounds = array<i64: 8, 64>}, {pipeline_mode = #tpu.pipeline_mode<synchronous>, transform_indices = @transform_12, window_bounds = array<i64: 64, 2>}, {pipeline_mode = #tpu.pipeline_mode<synchronous>, transform_indices = @transform_13, window_bounds = array<i64: 2, 64>}, {transform_indices = @transform_14, window_bounds = array<i64: 8, 64>}]} {
    %c0 = arith.constant 0 : index
    %c0_0 = arith.constant 0 : index
    %0 = vector.load %arg1[%c0, %c0_0] : memref<8x64xf32, #tpu.memory_space<vmem>>, vector<8x64xf32>
    %c0_1 = arith.constant 0 : index
    %c0_2 = arith.constant 0 : index
    %1 = vector.load %arg13[%c0_1, %c0_2] : memref<64x2xf32, #tpu.memory_space<vmem>>, vector<64x2xf32>
    %cst = arith.constant dense<0.000000e+00> : vector<8x2xf32>
    %2 = tpu.matmul %0, %1, %cst {dimension_numbers = #tpu.dot_dimension_numbers<[1], [0], [0], [1], [0, 0, 1, 1], [], []>} : vector<8x64xf32>, vector<64x2xf32>, vector<8x2xf32> -> vector<8x2xf32>
    %c0_3 = arith.constant 0 : index
    %c0_4 = arith.constant 0 : index
    %3 = vector.load %arg14[%c0_3, %c0_4] : memref<2x64xf32, #tpu.memory_space<vmem>>, vector<2x64xf32>
    %cst_5 = arith.constant dense<0.000000e+00> : vector<8x64xf32>
    %4 = tpu.matmul %2, %3, %cst_5 {dimension_numbers = #tpu.dot_dimension_numbers<[1], [0], [0], [1], [0, 0, 1, 1], [], []>} : vector<8x2xf32>, vector<2x64xf32>, vector<8x64xf32> -> vector<8x64xf32>
    %5 = arith.subf %0, %4 : vector<8x64xf32>
    %6 = arith.mulf %5, %5 : vector<8x64xf32>
    %c0_6 = arith.constant 0 : index
    %c0_7 = arith.constant 0 : index
    %7 = vector.load %arg13[%c0_6, %c0_7] : memref<64x2xf32, #tpu.memory_space<vmem>>, vector<64x2xf32>
    %cst_8 = arith.constant dense<0.000000e+00> : vector<8x2xf32>
    %8 = tpu.matmul %6, %7, %cst_8 {dimension_numbers = #tpu.dot_dimension_numbers<[1], [0], [0], [1], [0, 0, 1, 1], [], []>} : vector<8x64xf32>, vector<64x2xf32>, vector<8x2xf32> -> vector<8x2xf32>
    %c0_9 = arith.constant 0 : index
    %c0_10 = arith.constant 0 : index
    %9 = vector.load %arg14[%c0_9, %c0_10] : memref<2x64xf32, #tpu.memory_space<vmem>>, vector<2x64xf32>
    %cst_11 = arith.constant dense<0.000000e+00> : vector<8x64xf32>
    %10 = tpu.matmul %8, %9, %cst_11 {dimension_numbers = #tpu.dot_dimension_numbers<[1], [0], [0], [1], [0, 0, 1, 1], [], []>} : vector<8x2xf32>, vector<2x64xf32>, vector<8x64xf32> -> vector<8x64xf32>
    %cst_12 = arith.constant 9.99999974E-6 : f32
    %11 = vector.broadcast %cst_12 : f32 to vector<8x64xf32>
    %12 = arith.addf %10, %11 : vector<8x64xf32>
    %13 = math.rsqrt %12 : vector<8x64xf32>
    %14 = arith.mulf %5, %13 : vector<8x64xf32>
    %c0_13 = arith.constant 0 : index
    %c0_14 = arith.constant 0 : index
    %15 = vector.load %arg2[%c0_13, %c0_14] : memref<1x64xf32, #tpu.memory_space<vmem>>, vector<1x64xf32>
    %16 = vector.broadcast %15 : vector<1x64xf32> to vector<8x64xf32>
    %17 = arith.mulf %14, %16 : vector<8x64xf32>
    %c0_15 = arith.constant 0 : index
    %c0_16 = arith.constant 0 : index
    %18 = vector.load %arg3[%c0_15, %c0_16] : memref<1x64xf32, #tpu.memory_space<vmem>>, vector<1x64xf32>
    %19 = vector.broadcast %18 : vector<1x64xf32> to vector<8x64xf32>
    %20 = arith.addf %17, %19 : vector<8x64xf32>
    %21 = arith.truncf %20 : vector<8x64xf32> to vector<8x64xbf16>
    %cst_17 = arith.constant dense<0.000000e+00> : vector<64xf32>
    %22 = vector.multi_reduction <add>, %20, %cst_17 [0] : vector<8x64xf32> to vector<64xf32>
    %23 = vector.shape_cast %22 : vector<64xf32> to vector<1x64xf32>
    %cst_18 = arith.constant 8.000000e+00 : f32
    %24 = vector.broadcast %cst_18 : f32 to vector<1x64xf32>
    %25 = arith.divf %23, %24 : vector<1x64xf32>
    %26 = vector.extract_strided_slice %25 {offsets = [0, 0], sizes = [1, 32], strides = [1, 1]} : vector<1x64xf32> to vector<1x32xf32>
    %27 = vector.extract_strided_slice %25 {offsets = [0, 32], sizes = [1, 32], strides = [1, 1]} : vector<1x64xf32> to vector<1x32xf32>
    %28 = tpu.concatenate %26, %27 in 0 : vector<1x32xf32>, vector<1x32xf32> -> vector<2x32xf32>
    %29 = arith.truncf %28 : vector<2x32xf32> to vector<2x32xbf16>
    %c0_19 = arith.constant 0 : index
    %c0_20 = arith.constant 0 : index
    %30 = vector.load %arg4[%c0_19, %c0_20] : memref<32x32xbf16, #tpu.memory_space<vmem>>, vector<32x32xbf16>
    %cst_21 = arith.constant dense<0.000000e+00> : vector<2x32xf32>
    %31 = tpu.matmul %29, %30, %cst_21 {dimension_numbers = #tpu.dot_dimension_numbers<[1], [0], [0], [1], [0, 0, 1, 1], [], []>} : vector<2x32xbf16>, vector<32x32xbf16>, vector<2x32xf32> -> vector<2x32xf32>
    %c0_22 = arith.constant 0 : index
    %c0_23 = arith.constant 0 : index
    %32 = vector.load %arg5[%c0_22, %c0_23] : memref<1x32xf32, #tpu.memory_space<vmem>>, vector<1x32xf32>
    %33 = vector.broadcast %32 : vector<1x32xf32> to vector<2x32xf32>
    %34 = arith.addf %31, %33 : vector<2x32xf32>
    %cst_24 = arith.constant 5.000000e-01 : f32
    %35 = vector.broadcast %cst_24 : f32 to vector<2x32xf32>
    %36 = arith.mulf %35, %34 : vector<2x32xf32>
    %cst_25 = arith.constant 0.707106769 : f32
    %37 = vector.broadcast %cst_25 : f32 to vector<2x32xf32>
    %38 = arith.mulf %34, %37 : vector<2x32xf32>
    %39 = math.erf %38 : vector<2x32xf32>
    %cst_26 = arith.constant 1.000000e+00 : f32
    %40 = vector.broadcast %cst_26 : f32 to vector<2x32xf32>
    %41 = arith.addf %40, %39 : vector<2x32xf32>
    %42 = arith.mulf %36, %41 : vector<2x32xf32>
    %43 = arith.truncf %42 : vector<2x32xf32> to vector<2x32xbf16>
    %c0_27 = arith.constant 0 : index
    %c0_28 = arith.constant 0 : index
    %44 = vector.load %arg6[%c0_27, %c0_28] : memref<32x64xbf16, #tpu.memory_space<vmem>>, vector<32x64xbf16>
    %cst_29 = arith.constant dense<0.000000e+00> : vector<2x64xf32>
    %45 = tpu.matmul %43, %44, %cst_29 {dimension_numbers = #tpu.dot_dimension_numbers<[1], [0], [0], [1], [0, 0, 1, 1], [], []>} : vector<2x32xbf16>, vector<32x64xbf16>, vector<2x64xf32> -> vector<2x64xf32>
    %c0_30 = arith.constant 0 : index
    %c0_31 = arith.constant 0 : index
    %46 = vector.load %arg7[%c0_30, %c0_31] : memref<1x64xf32, #tpu.memory_space<vmem>>, vector<1x64xf32>
    %47 = vector.broadcast %46 : vector<1x64xf32> to vector<2x64xf32>
    %48 = arith.addf %45, %47 : vector<2x64xf32>
    %c0_32 = arith.constant 0 : index
    %c0_33 = arith.constant 0 : index
    %49 = vector.load %arg8[%c0_32, %c0_33] : memref<1x32xf32, #tpu.memory_space<vmem>>, vector<1x32xf32>
    %50 = vector.extract_strided_slice %48 {offsets = [0, 0], sizes = [2, 32], strides = [1, 1]} : vector<2x64xf32> to vector<2x32xf32>
    %cst_34 = arith.constant 1.000000e+00 : f32
    %51 = vector.broadcast %cst_34 : f32 to vector<2x32xf32>
    %52 = arith.addf %51, %50 : vector<2x32xf32>
    %53 = vector.broadcast %49 : vector<1x32xf32> to vector<2x32xf32>
    %54 = arith.mulf %53, %52 : vector<2x32xf32>
    %c0_35 = arith.constant 0 : index
    %c0_36 = arith.constant 0 : index
    %55 = vector.load %arg9[%c0_35, %c0_36] : memref<1x32xf32, #tpu.memory_space<vmem>>, vector<1x32xf32>
    %56 = vector.extract_strided_slice %48 {offsets = [0, 32], sizes = [2, 32], strides = [1, 1]} : vector<2x64xf32> to vector<2x32xf32>
    %57 = vector.broadcast %55 : vector<1x32xf32> to vector<2x32xf32>
    %58 = arith.addf %57, %56 : vector<2x32xf32>
    %59 = tpu.transpose %54, [1, 0] : vector<2x32xf32> -> vector<32x2xf32>
    %60 = tpu.transpose %58, [1, 0] : vector<2x32xf32> -> vector<32x2xf32>
    %61 = vector.extract_strided_slice %59 {offsets = [0, 0], sizes = [8, 2], strides = [1, 1]} : vector<32x2xf32> to vector<8x2xf32>
    %62 = vector.extract_strided_slice %59 {offsets = [8, 0], sizes = [8, 2], strides = [1, 1]} : vector<32x2xf32> to vector<8x2xf32>
    %63 = vector.extract_strided_slice %59 {offsets = [16, 0], sizes = [8, 2], strides = [1, 1]} : vector<32x2xf32> to vector<8x2xf32>
    %64 = vector.extract_strided_slice %59 {offsets = [24, 0], sizes = [8, 2], strides = [1, 1]} : vector<32x2xf32> to vector<8x2xf32>
    %65 = tpu.concatenate %61, %62, %63, %64 in 1 : vector<8x2xf32>, vector<8x2xf32>, vector<8x2xf32>, vector<8x2xf32> -> vector<8x8xf32>
    %66 = vector.extract_strided_slice %60 {offsets = [0, 0], sizes = [8, 2], strides = [1, 1]} : vector<32x2xf32> to vector<8x2xf32>
    %67 = vector.extract_strided_slice %60 {offsets = [8, 0], sizes = [8, 2], strides = [1, 1]} : vector<32x2xf32> to vector<8x2xf32>
    %68 = vector.extract_strided_slice %60 {offsets = [16, 0], sizes = [8, 2], strides = [1, 1]} : vector<32x2xf32> to vector<8x2xf32>
    %69 = vector.extract_strided_slice %60 {offsets = [24, 0], sizes = [8, 2], strides = [1, 1]} : vector<32x2xf32> to vector<8x2xf32>
    %70 = tpu.concatenate %66, %67, %68, %69 in 1 : vector<8x2xf32>, vector<8x2xf32>, vector<8x2xf32>, vector<8x2xf32> -> vector<8x8xf32>
    %c0_37 = arith.constant 0 : index
    %c0_38 = arith.constant 0 : index
    %71 = vector.load %arg12[%c0_37, %c0_38] : memref<8x64xf32, #tpu.memory_space<vmem>>, vector<8x64xf32>
    %cst_39 = arith.constant dense<0.000000e+00> : vector<8x64xf32>
    %72 = tpu.matmul %65, %71, %cst_39 {dimension_numbers = #tpu.dot_dimension_numbers<[1], [0], [0], [1], [0, 0, 1, 1], [], []>} : vector<8x8xf32>, vector<8x64xf32>, vector<8x64xf32> -> vector<8x64xf32>
    %c0_40 = arith.constant 0 : index
    %c0_41 = arith.constant 0 : index
    %73 = vector.load %arg12[%c0_40, %c0_41] : memref<8x64xf32, #tpu.memory_space<vmem>>, vector<8x64xf32>
    %cst_42 = arith.constant dense<0.000000e+00> : vector<8x64xf32>
    %74 = tpu.matmul %70, %73, %cst_42 {dimension_numbers = #tpu.dot_dimension_numbers<[1], [0], [0], [1], [0, 0, 1, 1], [], []>} : vector<8x8xf32>, vector<8x64xf32>, vector<8x64xf32> -> vector<8x64xf32>
    %c0_43 = arith.constant 0 : index
    %c0_44 = arith.constant 0 : index
    %75 = vector.load %arg10[%c0_43, %c0_44] : memref<16x8xbf16, #tpu.memory_space<vmem>>, vector<16x8xbf16>
    %cst_45 = arith.constant dense<0.000000e+00> : vector<16x64xf32>
    %76 = tpu.matmul %75, %21, %cst_45 {dimension_numbers = #tpu.dot_dimension_numbers<[1], [0], [0], [1], [0, 0, 1, 1], [], []>} : vector<16x8xbf16>, vector<8x64xbf16>, vector<16x64xf32> -> vector<16x64xf32>
    %77 = vector.extract_strided_slice %76 {offsets = [0, 0], sizes = [8, 64], strides = [1, 1]} : vector<16x64xf32> to vector<8x64xf32>
    %78 = vector.extract_strided_slice %76 {offsets = [8, 0], sizes = [8, 64], strides = [1, 1]} : vector<16x64xf32> to vector<8x64xf32>
    %79 = arith.mulf %77, %72 : vector<8x64xf32>
    %80 = arith.addf %79, %74 : vector<8x64xf32>
    %81 = arith.mulf %78, %72 : vector<8x64xf32>
    %82 = arith.mulf %80, %80 : vector<8x64xf32>
    %83 = arith.mulf %81, %81 : vector<8x64xf32>
    %84 = arith.addf %82, %83 : vector<8x64xf32>
    %85 = math.sqrt %84 : vector<8x64xf32>
    %cst_46 = arith.constant 5.000000e-01 : f32
    %86 = vector.broadcast %cst_46 : f32 to vector<8x64xf32>
    %87 = arith.mulf %86, %85 : vector<8x64xf32>
    %cst_47 = arith.constant 4.471500e-02 : f32
    %88 = vector.broadcast %cst_47 : f32 to vector<8x64xf32>
    %89 = arith.mulf %88, %85 : vector<8x64xf32>
    %90 = arith.mulf %89, %85 : vector<8x64xf32>
    %91 = arith.mulf %90, %85 : vector<8x64xf32>
    %92 = arith.addf %85, %91 : vector<8x64xf32>
    %cst_48 = arith.constant 0.797884583 : f32
    %93 = vector.broadcast %cst_48 : f32 to vector<8x64xf32>
    %94 = arith.mulf %93, %92 : vector<8x64xf32>
    %95 = math.tanh %94 : vector<8x64xf32>
    %cst_49 = arith.constant 1.000000e+00 : f32
    %96 = vector.broadcast %cst_49 : f32 to vector<8x64xf32>
    %97 = arith.addf %96, %95 : vector<8x64xf32>
    %98 = arith.mulf %87, %97 : vector<8x64xf32>
    %cst_50 = arith.constant 9.99999997E-7 : f32
    %99 = vector.broadcast %cst_50 : f32 to vector<8x64xf32>
    %100 = arith.addf %85, %99 : vector<8x64xf32>
    %101 = tpu.reciprocal %100 {approx = true} : vector<8x64xf32> -> vector<8x64xf32>
    %102 = arith.mulf %98, %101 : vector<8x64xf32>
    %103 = arith.mulf %80, %102 : vector<8x64xf32>
    %104 = arith.truncf %103 : vector<8x64xf32> to vector<8x64xbf16>
    %105 = arith.mulf %81, %102 : vector<8x64xf32>
    %106 = arith.truncf %105 : vector<8x64xf32> to vector<8x64xbf16>
    %107 = tpu.concatenate %104, %106 in 0 : vector<8x64xbf16>, vector<8x64xbf16> -> vector<16x64xbf16>
    %c0_51 = arith.constant 0 : index
    %c0_52 = arith.constant 0 : index
    %108 = vector.load %arg11[%c0_51, %c0_52] : memref<8x16xbf16, #tpu.memory_space<vmem>>, vector<8x16xbf16>
    %cst_53 = arith.constant dense<0.000000e+00> : vector<8x64xf32>
    %109 = tpu.matmul %108, %107, %cst_53 {dimension_numbers = #tpu.dot_dimension_numbers<[1], [0], [0], [1], [0, 0, 1, 1], [], []>} : vector<8x16xbf16>, vector<16x64xbf16>, vector<8x64xf32> -> vector<8x64xf32>
    %c0_54 = arith.constant 0 : index
    %c0_55 = arith.constant 0 : index
    %110 = vector.load %arg1[%c0_54, %c0_55] : memref<8x64xf32, #tpu.memory_space<vmem>>, vector<8x64xf32>
    %111 = arith.addf %110, %109 : vector<8x64xf32>
    %c0_56 = arith.constant 0 : index
    %c0_57 = arith.constant 0 : index
    %112 = vector.load %arg15[%c0_56, %c0_57] : memref<8x64xf32, #tpu.memory_space<vmem>>, vector<8x64xf32>
    tpu.vector_store %arg15[%c0_56, %c0_57], %111 {strides = array<i32>} : memref<8x64xf32, #tpu.memory_space<vmem>>, vector<8x64xf32>,
    return
  }
  func.func @transform_0(%arg0: i32) -> (i32, i32) {
    %c0_i32 = arith.constant 0 : i32
    %c0_i32_0 = arith.constant 0 : i32
    return %c0_i32, %arg0 : i32, i32
  }
  func.func @transform_1(%arg0: i32) -> (i32, i32) {
    %c0_i32 = arith.constant 0 : i32
    %c0_i32_0 = arith.constant 0 : i32
    %c0_i32_1 = arith.constant 0 : i32
    return %c0_i32, %c0_i32_0 : i32, i32
  }
  func.func @transform_2(%arg0: i32) -> (i32, i32) {
    %c0_i32 = arith.constant 0 : i32
    %c0_i32_0 = arith.constant 0 : i32
    %c0_i32_1 = arith.constant 0 : i32
    return %c0_i32, %c0_i32_0 : i32, i32
  }
  func.func @transform_3(%arg0: i32) -> (i32, i32) {
    %c0_i32 = arith.constant 0 : i32
    %c0_i32_0 = arith.constant 0 : i32
    %c0_i32_1 = arith.constant 0 : i32
    return %c0_i32, %c0_i32_0 : i32, i32
  }
  func.func @transform_4(%arg0: i32) -> (i32, i32) {
    %c0_i32 = arith.constant 0 : i32
    %c0_i32_0 = arith.constant 0 : i32
    %c0_i32_1 = arith.constant 0 : i32
    return %c0_i32, %c0_i32_0 : i32, i32
  }
  func.func @transform_5(%arg0: i32) -> (i32, i32) {
    %c0_i32 = arith.constant 0 : i32
    %c0_i32_0 = arith.constant 0 : i32
    %c0_i32_1 = arith.constant 0 : i32
    return %c0_i32, %c0_i32_0 : i32, i32
  }
  func.func @transform_6(%arg0: i32) -> (i32, i32) {
    %c0_i32 = arith.constant 0 : i32
    %c0_i32_0 = arith.constant 0 : i32
    %c0_i32_1 = arith.constant 0 : i32
    return %c0_i32, %c0_i32_0 : i32, i32
  }
  func.func @transform_7(%arg0: i32) -> (i32, i32) {
    %c0_i32 = arith.constant 0 : i32
    %c0_i32_0 = arith.constant 0 : i32
    %c0_i32_1 = arith.constant 0 : i32
    return %c0_i32, %c0_i32_0 : i32, i32
  }
  func.func @transform_8(%arg0: i32) -> (i32, i32) {
    %c0_i32 = arith.constant 0 : i32
    %c0_i32_0 = arith.constant 0 : i32
    %c0_i32_1 = arith.constant 0 : i32
    return %c0_i32, %c0_i32_0 : i32, i32
  }
  func.func @transform_9(%arg0: i32) -> (i32, i32) {
    %c0_i32 = arith.constant 0 : i32
    %c0_i32_0 = arith.constant 0 : i32
    %c0_i32_1 = arith.constant 0 : i32
    return %c0_i32, %c0_i32_0 : i32, i32
  }
  func.func @transform_10(%arg0: i32) -> (i32, i32) {
    %c0_i32 = arith.constant 0 : i32
    %c0_i32_0 = arith.constant 0 : i32
    %c0_i32_1 = arith.constant 0 : i32
    return %c0_i32, %c0_i32_0 : i32, i32
  }
  func.func @transform_11(%arg0: i32) -> (i32, i32) {
    %c0_i32 = arith.constant 0 : i32
    %c0_i32_0 = arith.constant 0 : i32
    %c0_i32_1 = arith.constant 0 : i32
    return %c0_i32, %c0_i32_0 : i32, i32
  }
  func.func @transform_12(%arg0: i32) -> (i32, i32) {
    %c0_i32 = arith.constant 0 : i32
    %c0_i32_0 = arith.constant 0 : i32
    %c0_i32_1 = arith.constant 0 : i32
    return %c0_i32, %c0_i32_0 : i32, i32
  }
  func.func @transform_13(%arg0: i32) -> (i32, i32) {
    %c0_i32 = arith.constant 0 : i32
    %c0_i32_0 = arith.constant 0 : i32
    %c0_i32_1 = arith.constant 0 : i32
    return %c0_i32, %c0_i32_0 : i32, i32
  }
  func.func @transform_14(%arg0: i32) -> (i32, i32) {
    %c0_i32 = arith.constant 0 : i32
    %c0_i32_0 = arith.constant 0 : i32
    return %c0_i32, %arg0 : i32, i32
  }
}

module attributes {stable_mosaic.version = 11 : i64} {
  func.func @kernel_folded(%arg0: i32, %arg1: memref<8x64xf32, #tpu.memory_space<vmem>>, %arg2: memref<1x64xf32, #tpu.memory_space<vmem>>, %arg3: memref<1x64xf32, #tpu.memory_space<vmem>>, %arg4: memref<32x32xbf16, #tpu.memory_space<vmem>>, %arg5: memref<1x32xf32, #tpu.memory_space<vmem>>, %arg6: memref<32x64xbf16, #tpu.memory_space<vmem>>, %arg7: memref<1x64xf32, #tpu.memory_space<vmem>>, %arg8: memref<1x32xf32, #tpu.memory_space<vmem>>, %arg9: memref<1x32xf32, #tpu.memory_space<vmem>>, %arg10: memref<16x8xbf16, #tpu.memory_space<vmem>>, %arg11: memref<8x16xbf16, #tpu.memory_space<vmem>>, %arg12: memref<8x64xf32, #tpu.memory_space<vmem>>, %arg13: memref<64x2xf32, #tpu.memory_space<vmem>>, %arg14: memref<2x64xf32, #tpu.memory_space<vmem>>, %arg15: memref<8x64xf32, #tpu.memory_space<vmem>>) attributes {dimension_semantics = [#tpu.dimension_semantics<parallel>], iteration_bounds = array<i64: 1>, scalar_prefetch = 0 : i64, scratch_operands = 0 : i64, tpu.core_type = #tpu.core_type<tc>, window_params = [{transform_indices = @transform_0, window_bounds = array<i64: 8, 64>}, {pipeline_mode = #tpu.pipeline_mode<synchronous>, transform_indices = @transform_1, window_bounds = array<i64: 1, 64>}, {pipeline_mode = #tpu.pipeline_mode<synchronous>, transform_indices = @transform_2, window_bounds = array<i64: 1, 64>}, {pipeline_mode = #tpu.pipeline_mode<synchronous>, transform_indices = @transform_3, window_bounds = array<i64: 32, 32>}, {pipeline_mode = #tpu.pipeline_mode<synchronous>, transform_indices = @transform_4, window_bounds = array<i64: 1, 32>}, {pipeline_mode = #tpu.pipeline_mode<synchronous>, transform_indices = @transform_5, window_bounds = array<i64: 32, 64>}, {pipeline_mode = #tpu.pipeline_mode<synchronous>, transform_indices = @transform_6, window_bounds = array<i64: 1, 64>}, {pipeline_mode = #tpu.pipeline_mode<synchronous>, transform_indices = @transform_7, window_bounds = array<i64: 1, 32>}, {pipeline_mode = #tpu.pipeline_mode<synchronous>, transform_indices = @transform_8, window_bounds = array<i64: 1, 32>}, {pipeline_mode = #tpu.pipeline_mode<synchronous>, transform_indices = @transform_9, window_bounds = array<i64: 16, 8>}, {pipeline_mode = #tpu.pipeline_mode<synchronous>, transform_indices = @transform_10, window_bounds = array<i64: 8, 16>}, {pipeline_mode = #tpu.pipeline_mode<synchronous>, transform_indices = @transform_11, window_bounds = array<i64: 8, 64>}, {pipeline_mode = #tpu.pipeline_mode<synchronous>, transform_indices = @transform_12, window_bounds = array<i64: 64, 2>}, {pipeline_mode = #tpu.pipeline_mode<synchronous>, transform_indices = @transform_13, window_bounds = array<i64: 2, 64>}, {transform_indices = @transform_14, window_bounds = array<i64: 8, 64>}]} {
    %c0 = arith.constant 0 : index
    %c0_0 = arith.constant 0 : index
    %0 = vector.load %arg1[%c0, %c0_0] : memref<8x64xf32, #tpu.memory_space<vmem>>, vector<8x64xf32>
    %c0_1 = arith.constant 0 : index
    %c0_2 = arith.constant 0 : index
    %1 = vector.load %arg13[%c0_1, %c0_2] : memref<64x2xf32, #tpu.memory_space<vmem>>, vector<64x2xf32>
    %cst = arith.constant dense<0.000000e+00> : vector<8x2xf32>
    %2 = tpu.matmul %0, %1, %cst {dimension_numbers = #tpu.dot_dimension_numbers<[1], [0], [0], [1], [0, 0, 1, 1], [], []>} : vector<8x64xf32>, vector<64x2xf32>, vector<8x2xf32> -> vector<8x2xf32>
    %c0_3 = arith.constant 0 : index
    %c0_4 = arith.constant 0 : index
    %3 = vector.load %arg14[%c0_3, %c0_4] : memref<2x64xf32, #tpu.memory_space<vmem>>, vector<2x64xf32>
    %cst_5 = arith.constant dense<0.000000e+00> : vector<8x64xf32>
    %4 = tpu.matmul %2, %3, %cst_5 {dimension_numbers = #tpu.dot_dimension_numbers<[1], [0], [0], [1], [0, 0, 1, 1], [], []>} : vector<8x2xf32>, vector<2x64xf32>, vector<8x64xf32> -> vector<8x64xf32>
    %5 = arith.subf %0, %4 : vector<8x64xf32>
    %6 = arith.mulf %5, %5 : vector<8x64xf32>
    %c0_6 = arith.constant 0 : index
    %c0_7 = arith.constant 0 : index
    %7 = vector.load %arg13[%c0_6, %c0_7] : memref<64x2xf32, #tpu.memory_space<vmem>>, vector<64x2xf32>
    %cst_8 = arith.constant dense<0.000000e+00> : vector<8x2xf32>
    %8 = tpu.matmul %6, %7, %cst_8 {dimension_numbers = #tpu.dot_dimension_numbers<[1], [0], [0], [1], [0, 0, 1, 1], [], []>} : vector<8x64xf32>, vector<64x2xf32>, vector<8x2xf32> -> vector<8x2xf32>
    %c0_9 = arith.constant 0 : index
    %c0_10 = arith.constant 0 : index
    %9 = vector.load %arg14[%c0_9, %c0_10] : memref<2x64xf32, #tpu.memory_space<vmem>>, vector<2x64xf32>
    %cst_11 = arith.constant dense<0.000000e+00> : vector<8x64xf32>
    %10 = tpu.matmul %8, %9, %cst_11 {dimension_numbers = #tpu.dot_dimension_numbers<[1], [0], [0], [1], [0, 0, 1, 1], [], []>} : vector<8x2xf32>, vector<2x64xf32>, vector<8x64xf32> -> vector<8x64xf32>
    %cst_12 = arith.constant 9.99999974E-6 : f32
    %11 = vector.broadcast %cst_12 : f32 to vector<8x64xf32>
    %12 = arith.addf %10, %11 : vector<8x64xf32>
    %13 = math.rsqrt %12 : vector<8x64xf32>
    %14 = arith.mulf %5, %13 : vector<8x64xf32>
    %c0_13 = arith.constant 0 : index
    %c0_14 = arith.constant 0 : index
    %15 = vector.load %arg2[%c0_13, %c0_14] : memref<1x64xf32, #tpu.memory_space<vmem>>, vector<1x64xf32>
    %16 = vector.broadcast %15 : vector<1x64xf32> to vector<8x64xf32>
    %17 = arith.mulf %14, %16 : vector<8x64xf32>
    %c0_15 = arith.constant 0 : index
    %c0_16 = arith.constant 0 : index
    %18 = vector.load %arg3[%c0_15, %c0_16] : memref<1x64xf32, #tpu.memory_space<vmem>>, vector<1x64xf32>
    %19 = vector.broadcast %18 : vector<1x64xf32> to vector<8x64xf32>
    %20 = arith.addf %17, %19 : vector<8x64xf32>
    %21 = arith.truncf %20 : vector<8x64xf32> to vector<8x64xbf16>
    %cst_17 = arith.constant dense<0.000000e+00> : vector<64xf32>
    %22 = vector.multi_reduction <add>, %20, %cst_17 [0] : vector<8x64xf32> to vector<64xf32>
    %23 = vector.shape_cast %22 : vector<64xf32> to vector<1x64xf32>
    %cst_18 = arith.constant 8.000000e+00 : f32
    %24 = vector.broadcast %cst_18 : f32 to vector<1x64xf32>
    %25 = arith.divf %23, %24 : vector<1x64xf32>
    %26 = vector.extract_strided_slice %25 {offsets = [0, 0], sizes = [1, 32], strides = [1, 1]} : vector<1x64xf32> to vector<1x32xf32>
    %27 = vector.extract_strided_slice %25 {offsets = [0, 32], sizes = [1, 32], strides = [1, 1]} : vector<1x64xf32> to vector<1x32xf32>
    %28 = tpu.concatenate %26, %27 in 0 : vector<1x32xf32>, vector<1x32xf32> -> vector<2x32xf32>
    %29 = arith.truncf %28 : vector<2x32xf32> to vector<2x32xbf16>
    %c0_19 = arith.constant 0 : index
    %c0_20 = arith.constant 0 : index
    %30 = vector.load %arg4[%c0_19, %c0_20] : memref<32x32xbf16, #tpu.memory_space<vmem>>, vector<32x32xbf16>
    %cst_21 = arith.constant dense<0.000000e+00> : vector<2x32xf32>
    %31 = tpu.matmul %29, %30, %cst_21 {dimension_numbers = #tpu.dot_dimension_numbers<[1], [0], [0], [1], [0, 0, 1, 1], [], []>} : vector<2x32xbf16>, vector<32x32xbf16>, vector<2x32xf32> -> vector<2x32xf32>
    %c0_22 = arith.constant 0 : index
    %c0_23 = arith.constant 0 : index
    %32 = vector.load %arg5[%c0_22, %c0_23] : memref<1x32xf32, #tpu.memory_space<vmem>>, vector<1x32xf32>
    %33 = vector.broadcast %32 : vector<1x32xf32> to vector<2x32xf32>
    %34 = arith.addf %31, %33 : vector<2x32xf32>
    %cst_24 = arith.constant 5.000000e-01 : f32
    %35 = vector.broadcast %cst_24 : f32 to vector<2x32xf32>
    %36 = arith.mulf %35, %34 : vector<2x32xf32>
    %cst_25 = arith.constant 0.707106769 : f32
    %37 = vector.broadcast %cst_25 : f32 to vector<2x32xf32>
    %38 = arith.mulf %34, %37 : vector<2x32xf32>
    %39 = math.erf %38 : vector<2x32xf32>
    %cst_26 = arith.constant 1.000000e+00 : f32
    %40 = vector.broadcast %cst_26 : f32 to vector<2x32xf32>
    %41 = arith.addf %40, %39 : vector<2x32xf32>
    %42 = arith.mulf %36, %41 : vector<2x32xf32>
    %43 = arith.truncf %42 : vector<2x32xf32> to vector<2x32xbf16>
    %c0_27 = arith.constant 0 : index
    %c0_28 = arith.constant 0 : index
    %44 = vector.load %arg6[%c0_27, %c0_28] : memref<32x64xbf16, #tpu.memory_space<vmem>>, vector<32x64xbf16>
    %cst_29 = arith.constant dense<0.000000e+00> : vector<2x64xf32>
    %45 = tpu.matmul %43, %44, %cst_29 {dimension_numbers = #tpu.dot_dimension_numbers<[1], [0], [0], [1], [0, 0, 1, 1], [], []>} : vector<2x32xbf16>, vector<32x64xbf16>, vector<2x64xf32> -> vector<2x64xf32>
    %c0_30 = arith.constant 0 : index
    %c0_31 = arith.constant 0 : index
    %46 = vector.load %arg7[%c0_30, %c0_31] : memref<1x64xf32, #tpu.memory_space<vmem>>, vector<1x64xf32>
    %47 = vector.broadcast %46 : vector<1x64xf32> to vector<2x64xf32>
    %48 = arith.addf %45, %47 : vector<2x64xf32>
    %c0_32 = arith.constant 0 : index
    %c0_33 = arith.constant 0 : index
    %49 = vector.load %arg8[%c0_32, %c0_33] : memref<1x32xf32, #tpu.memory_space<vmem>>, vector<1x32xf32>
    %50 = vector.extract_strided_slice %48 {offsets = [0, 0], sizes = [2, 32], strides = [1, 1]} : vector<2x64xf32> to vector<2x32xf32>
    %cst_34 = arith.constant 1.000000e+00 : f32
    %51 = vector.broadcast %cst_34 : f32 to vector<2x32xf32>
    %52 = arith.addf %51, %50 : vector<2x32xf32>
    %53 = vector.broadcast %49 : vector<1x32xf32> to vector<2x32xf32>
    %54 = arith.mulf %53, %52 : vector<2x32xf32>
    %c0_35 = arith.constant 0 : index
    %c0_36 = arith.constant 0 : index
    %55 = vector.load %arg9[%c0_35, %c0_36] : memref<1x32xf32, #tpu.memory_space<vmem>>, vector<1x32xf32>
    %56 = vector.extract_strided_slice %48 {offsets = [0, 32], sizes = [2, 32], strides = [1, 1]} : vector<2x64xf32> to vector<2x32xf32>
    %57 = vector.broadcast %55 : vector<1x32xf32> to vector<2x32xf32>
    %58 = arith.addf %57, %56 : vector<2x32xf32>
    %59 = tpu.transpose %54, [1, 0] : vector<2x32xf32> -> vector<32x2xf32>
    %60 = tpu.transpose %58, [1, 0] : vector<2x32xf32> -> vector<32x2xf32>
    %61 = vector.extract_strided_slice %59 {offsets = [0, 0], sizes = [8, 2], strides = [1, 1]} : vector<32x2xf32> to vector<8x2xf32>
    %62 = vector.extract_strided_slice %59 {offsets = [8, 0], sizes = [8, 2], strides = [1, 1]} : vector<32x2xf32> to vector<8x2xf32>
    %63 = vector.extract_strided_slice %59 {offsets = [16, 0], sizes = [8, 2], strides = [1, 1]} : vector<32x2xf32> to vector<8x2xf32>
    %64 = vector.extract_strided_slice %59 {offsets = [24, 0], sizes = [8, 2], strides = [1, 1]} : vector<32x2xf32> to vector<8x2xf32>
    %65 = tpu.concatenate %61, %62, %63, %64 in 1 : vector<8x2xf32>, vector<8x2xf32>, vector<8x2xf32>, vector<8x2xf32> -> vector<8x8xf32>
    %66 = vector.extract_strided_slice %60 {offsets = [0, 0], sizes = [8, 2], strides = [1, 1]} : vector<32x2xf32> to vector<8x2xf32>
    %67 = vector.extract_strided_slice %60 {offsets = [8, 0], sizes = [8, 2], strides = [1, 1]} : vector<32x2xf32> to vector<8x2xf32>
    %68 = vector.extract_strided_slice %60 {offsets = [16, 0], sizes = [8, 2], strides = [1, 1]} : vector<32x2xf32> to vector<8x2xf32>
    %69 = vector.extract_strided_slice %60 {offsets = [24, 0], sizes = [8, 2], strides = [1, 1]} : vector<32x2xf32> to vector<8x2xf32>
    %70 = tpu.concatenate %66, %67, %68, %69 in 1 : vector<8x2xf32>, vector<8x2xf32>, vector<8x2xf32>, vector<8x2xf32> -> vector<8x8xf32>
    %c0_37 = arith.constant 0 : index
    %c0_38 = arith.constant 0 : index
    %71 = vector.load %arg12[%c0_37, %c0_38] : memref<8x64xf32, #tpu.memory_space<vmem>>, vector<8x64xf32>
    %cst_39 = arith.constant dense<0.000000e+00> : vector<8x64xf32>
    %72 = tpu.matmul %65, %71, %cst_39 {dimension_numbers = #tpu.dot_dimension_numbers<[1], [0], [0], [1], [0, 0, 1, 1], [], []>} : vector<8x8xf32>, vector<8x64xf32>, vector<8x64xf32> -> vector<8x64xf32>
    %c0_40 = arith.constant 0 : index
    %c0_41 = arith.constant 0 : index
    %73 = vector.load %arg12[%c0_40, %c0_41] : memref<8x64xf32, #tpu.memory_space<vmem>>, vector<8x64xf32>
    %cst_42 = arith.constant dense<0.000000e+00> : vector<8x64xf32>
    %74 = tpu.matmul %70, %73, %cst_42 {dimension_numbers = #tpu.dot_dimension_numbers<[1], [0], [0], [1], [0, 0, 1, 1], [], []>} : vector<8x8xf32>, vector<8x64xf32>, vector<8x64xf32> -> vector<8x64xf32>
    %c0_43 = arith.constant 0 : index
    %c0_44 = arith.constant 0 : index
    %75 = vector.load %arg10[%c0_43, %c0_44] : memref<16x8xbf16, #tpu.memory_space<vmem>>, vector<16x8xbf16>
    %cst_45 = arith.constant dense<0.000000e+00> : vector<16x64xf32>
    %76 = tpu.matmul %75, %21, %cst_45 {dimension_numbers = #tpu.dot_dimension_numbers<[1], [0], [0], [1], [0, 0, 1, 1], [], []>} : vector<16x8xbf16>, vector<8x64xbf16>, vector<16x64xf32> -> vector<16x64xf32>
    %77 = vector.extract_strided_slice %76 {offsets = [0, 0], sizes = [8, 64], strides = [1, 1]} : vector<16x64xf32> to vector<8x64xf32>
    %78 = vector.extract_strided_slice %76 {offsets = [8, 0], sizes = [8, 64], strides = [1, 1]} : vector<16x64xf32> to vector<8x64xf32>
    %79 = arith.mulf %77, %72 : vector<8x64xf32>
    %80 = arith.addf %79, %74 : vector<8x64xf32>
    %81 = arith.mulf %78, %72 : vector<8x64xf32>
    %82 = arith.mulf %80, %80 : vector<8x64xf32>
    %83 = arith.mulf %81, %81 : vector<8x64xf32>
    %84 = arith.addf %82, %83 : vector<8x64xf32>
    %85 = math.sqrt %84 : vector<8x64xf32>
    %cst_46 = arith.constant 5.000000e-01 : f32
    %86 = vector.broadcast %cst_46 : f32 to vector<8x64xf32>
    %87 = arith.mulf %86, %85 : vector<8x64xf32>
    %cst_47 = arith.constant 4.471500e-02 : f32
    %88 = vector.broadcast %cst_47 : f32 to vector<8x64xf32>
    %89 = arith.mulf %88, %85 : vector<8x64xf32>
    %90 = arith.mulf %89, %85 : vector<8x64xf32>
    %91 = arith.mulf %90, %85 : vector<8x64xf32>
    %92 = arith.addf %85, %91 : vector<8x64xf32>
    %cst_48 = arith.constant 0.797884583 : f32
    %93 = vector.broadcast %cst_48 : f32 to vector<8x64xf32>
    %94 = arith.mulf %93, %92 : vector<8x64xf32>
    %95 = math.tanh %94 : vector<8x64xf32>
    %cst_49 = arith.constant 1.000000e+00 : f32
    %96 = vector.broadcast %cst_49 : f32 to vector<8x64xf32>
    %97 = arith.addf %96, %95 : vector<8x64xf32>
    %98 = arith.mulf %87, %97 : vector<8x64xf32>
    %cst_50 = arith.constant 9.99999997E-7 : f32
    %99 = vector.broadcast %cst_50 : f32 to vector<8x64xf32>
    %100 = arith.addf %85, %99 : vector<8x64xf32>
    %101 = tpu.reciprocal %100 {approx = true} : vector<8x64xf32> -> vector<8x64xf32>
    %102 = arith.mulf %98, %101 : vector<8x64xf32>
    %103 = arith.mulf %80, %102 : vector<8x64xf32>
    %104 = arith.truncf %103 : vector<8x64xf32> to vector<8x64xbf16>
    %105 = arith.mulf %81, %102 : vector<8x64xf32>
    %106 = arith.truncf %105 : vector<8x64xf32> to vector<8x64xbf16>
    %107 = tpu.concatenate %104, %106 in 0 : vector<8x64xbf16>, vector<8x64xbf16> -> vector<16x64xbf16>
    %c0_51 = arith.constant 0 : index
    %c0_52 = arith.constant 0 : index
    %108 = vector.load %arg11[%c0_51, %c0_52] : memref<8x16xbf16, #tpu.memory_space<vmem>>, vector<8x16xbf16>
    %cst_53 = arith.constant dense<0.000000e+00> : vector<8x64xf32>
    %109 = tpu.matmul %108, %107, %cst_53 {dimension_numbers = #tpu.dot_dimension_numbers<[1], [0], [0], [1], [0, 0, 1, 1], [], []>} : vector<8x16xbf16>, vector<16x64xbf16>, vector<8x64xf32> -> vector<8x64xf32>
    %c0_54 = arith.constant 0 : index
    %c0_55 = arith.constant 0 : index
    %110 = vector.load %arg1[%c0_54, %c0_55] : memref<8x64xf32, #tpu.memory_space<vmem>>, vector<8x64xf32>
    %111 = arith.addf %110, %109 : vector<8x64xf32>
    %c0_56 = arith.constant 0 : index
    %c0_57 = arith.constant 0 : index
    %112 = vector.load %arg15[%c0_56, %c0_57] : memref<8x64xf32, #tpu.memory_space<vmem>>, vector<8x64xf32>
    tpu.vector_store %arg15[%c0_56, %c0_57], %111 {strides = array<i32>} : memref<8x64xf32, #tpu.memory_space<vmem>>, vector<8x64xf32>,
    return
  }
  func.func @transform_0(%arg0: i32) -> (i32, i32) {
    %c0_i32 = arith.constant 0 : i32
    %c0_i32_0 = arith.constant 0 : i32
    return %c0_i32, %arg0 : i32, i32
  }
  func.func @transform_1(%arg0: i32) -> (i32, i32) {
    %c0_i32 = arith.constant 0 : i32
    %c0_i32_0 = arith.constant 0 : i32
    %c0_i32_1 = arith.constant 0 : i32
    return %c0_i32, %c0_i32_0 : i32, i32
  }
  func.func @transform_2(%arg0: i32) -> (i32, i32) {
    %c0_i32 = arith.constant 0 : i32
    %c0_i32_0 = arith.constant 0 : i32
    %c0_i32_1 = arith.constant 0 : i32
    return %c0_i32, %c0_i32_0 : i32, i32
  }
  func.func @transform_3(%arg0: i32) -> (i32, i32) {
    %c0_i32 = arith.constant 0 : i32
    %c0_i32_0 = arith.constant 0 : i32
    %c0_i32_1 = arith.constant 0 : i32
    return %c0_i32, %c0_i32_0 : i32, i32
  }
  func.func @transform_4(%arg0: i32) -> (i32, i32) {
    %c0_i32 = arith.constant 0 : i32
    %c0_i32_0 = arith.constant 0 : i32
    %c0_i32_1 = arith.constant 0 : i32
    return %c0_i32, %c0_i32_0 : i32, i32
  }
  func.func @transform_5(%arg0: i32) -> (i32, i32) {
    %c0_i32 = arith.constant 0 : i32
    %c0_i32_0 = arith.constant 0 : i32
    %c0_i32_1 = arith.constant 0 : i32
    return %c0_i32, %c0_i32_0 : i32, i32
  }
  func.func @transform_6(%arg0: i32) -> (i32, i32) {
    %c0_i32 = arith.constant 0 : i32
    %c0_i32_0 = arith.constant 0 : i32
    %c0_i32_1 = arith.constant 0 : i32
    return %c0_i32, %c0_i32_0 : i32, i32
  }
  func.func @transform_7(%arg0: i32) -> (i32, i32) {
    %c0_i32 = arith.constant 0 : i32
    %c0_i32_0 = arith.constant 0 : i32
    %c0_i32_1 = arith.constant 0 : i32
    return %c0_i32, %c0_i32_0 : i32, i32
  }
  func.func @transform_8(%arg0: i32) -> (i32, i32) {
    %c0_i32 = arith.constant 0 : i32
    %c0_i32_0 = arith.constant 0 : i32
    %c0_i32_1 = arith.constant 0 : i32
    return %c0_i32, %c0_i32_0 : i32, i32
  }
  func.func @transform_9(%arg0: i32) -> (i32, i32) {
    %c0_i32 = arith.constant 0 : i32
    %c0_i32_0 = arith.constant 0 : i32
    %c0_i32_1 = arith.constant 0 : i32
    return %c0_i32, %c0_i32_0 : i32, i32
  }
  func.func @transform_10(%arg0: i32) -> (i32, i32) {
    %c0_i32 = arith.constant 0 : i32
    %c0_i32_0 = arith.constant 0 : i32
    %c0_i32_1 = arith.constant 0 : i32
    return %c0_i32, %c0_i32_0 : i32, i32
  }
  func.func @transform_11(%arg0: i32) -> (i32, i32) {
    %c0_i32 = arith.constant 0 : i32
    %c0_i32_0 = arith.constant 0 : i32
    %c0_i32_1 = arith.constant 0 : i32
    return %c0_i32, %c0_i32_0 : i32, i32
  }
  func.func @transform_12(%arg0: i32) -> (i32, i32) {
    %c0_i32 = arith.constant 0 : i32
    %c0_i32_0 = arith.constant 0 : i32
    %c0_i32_1 = arith.constant 0 : i32
    return %c0_i32, %c0_i32_0 : i32, i32
  }
  func.func @transform_13(%arg0: i32) -> (i32, i32) {
    %c0_i32 = arith.constant 0 : i32
    %c0_i32_0 = arith.constant 0 : i32
    %c0_i32_1 = arith.constant 0 : i32
    return %c0_i32, %c0_i32_0 : i32, i32
  }
  func.func @transform_14(%arg0: i32) -> (i32, i32) {
    %c0_i32 = arith.constant 0 : i32
    %c0_i32_0 = arith.constant 0 : i32
    return %c0_i32, %arg0 : i32, i32
  }
}

</mosaic_0001>

<llo_original>
// kernel: tpu_custom_call.1
$region0: #{tpu_custom_call.1}
  #allocation0 [shape = 'u32[]', space=smem, size = 0x4, offset = 0x4, fixed_abs, tag = 'smem constant byte address 0x4 - core index']
  #allocation1 [shape = 'u32[144,128]{1,0:T(1,128)}', space=vmem, size = 0x12000, scoped, tag = 'internal scratch']
  %s0 = inlined_call_operand.vmem [shape: f32[8,64], index: 0, kind: input, shape index: {}]
  %s1 = inlined_call_operand.vmem [shape: f32[1,64], index: 1, kind: input, shape index: {}]
  %s2 = inlined_call_operand.vmem [shape: f32[1,64], index: 2, kind: input, shape index: {}]
  %s3 = inlined_call_operand.vmem [shape: bf16[32,32], index: 3, kind: input, shape index: {}]
  %s4 = inlined_call_operand.vmem [shape: f32[1,32], index: 4, kind: input, shape index: {}]
  %s5 = inlined_call_operand.vmem [shape: bf16[32,64], index: 5, kind: input, shape index: {}]
  %s6 = inlined_call_operand.vmem [shape: f32[1,64], index: 6, kind: input, shape index: {}]
  %s7 = inlined_call_operand.vmem [shape: f32[1,32], index: 7, kind: input, shape index: {}]
  %s8 = inlined_call_operand.vmem [shape: f32[1,32], index: 8, kind: input, shape index: {}]
  %s9 = inlined_call_operand.vmem [shape: bf16[16,8], index: 9, kind: input, shape index: {}]
  %s10 = inlined_call_operand.vmem [shape: bf16[8,16], index: 10, kind: input, shape index: {}]
  %s11 = inlined_call_operand.vmem [shape: f32[8,64], index: 11, kind: input, shape index: {}]
  %s12 = inlined_call_operand.vmem [shape: f32[64,2], index: 12, kind: input, shape index: {}]
  %s13 = inlined_call_operand.vmem [shape: f32[2,64], index: 13, kind: input, shape index: {}]
  %s14 = inlined_call_operand.hbm [shape: f32[8,64], index: 14, kind: output, shape index: {}]
  %s15 = sld [smem:[#allocation0]]
  $region66: #{tpu_custom_call.1} parent=0
    _
  %s17 = ssub.s32 1, %s15
  %s18 = scalar_select 0, %s17, %s15
  $region1: #{tpu_custom_call.1} parent=0
    #allocation2 [shape = 'u8[4096]{0}', space=vmem, size = 0x1000, scoped, tag = 'output window, operand 0, single buffered']
    #allocation3 [shape = 's32[1]{0}', space=sflag, size = 0x4, scoped, tag = 'scoped memory for tpu_custom_call.1']
    %19 = vsyncpa [#allocation3], 0
    // Predicated region
    $region2: #{tpu_custom_call.1} parent=1 // pred_check
      _
    $region3: #{tpu_custom_call.1} parent=1 // pred_check_branch
      %21 = sbr.rel (0) target = $region5
    $region4: #{tpu_custom_call.1} parent=1 // pred_region
      _
    $region5: #{tpu_custom_call.1} parent=1 // pred_fallthru
      _
    // Predicated region
    $region6: #{tpu_custom_call.1} parent=1 // pred_check
      _
    $region7: #{tpu_custom_call.1} parent=1 // pred_check_branch
      %23 = sbr.rel (0) target = $region9
    $region8: #{tpu_custom_call.1} parent=1 // pred_region
      _
    $region9: #{tpu_custom_call.1} parent=1 // pred_fallthru
      _
    // Predicated region
    $region10: #{tpu_custom_call.1} parent=1 // pred_check
      _
    $region11: #{tpu_custom_call.1} parent=1 // pred_check_branch
      %25 = sbr.rel (0) target = $region13
    $region12: #{tpu_custom_call.1} parent=1 // pred_region
      _
    $region13: #{tpu_custom_call.1} parent=1 // pred_fallthru
      _
    // Predicated region
    $region14: #{tpu_custom_call.1} parent=1 // pred_check
      _
    $region15: #{tpu_custom_call.1} parent=1 // pred_check_branch
      %27 = sbr.rel (0) target = $region17
    $region16: #{tpu_custom_call.1} parent=1 // pred_region
      _
    $region17: #{tpu_custom_call.1} parent=1 // pred_fallthru
      _
    // Predicated region
    $region18: #{tpu_custom_call.1} parent=1 // pred_check
      _
    $region19: #{tpu_custom_call.1} parent=1 // pred_check_branch
      %29 = sbr.rel (0) target = $region21
    $region20: #{tpu_custom_call.1} parent=1 // pred_region
      _
    $region21: #{tpu_custom_call.1} parent=1 // pred_fallthru
      _
    // Predicated region
    $region22: #{tpu_custom_call.1} parent=1 // pred_check
      _
    $region23: #{tpu_custom_call.1} parent=1 // pred_check_branch
      %31 = sbr.rel (0) target = $region25
    $region24: #{tpu_custom_call.1} parent=1 // pred_region
      _
    $region25: #{tpu_custom_call.1} parent=1 // pred_fallthru
      _
    // Predicated region
    $region26: #{tpu_custom_call.1} parent=1 // pred_check
      _
    $region27: #{tpu_custom_call.1} parent=1 // pred_check_branch
      %33 = sbr.rel (0) target = $region29
    $region28: #{tpu_custom_call.1} parent=1 // pred_region
      _
    $region29: #{tpu_custom_call.1} parent=1 // pred_fallthru
      _
    // Predicated region
    $region30: #{tpu_custom_call.1} parent=1 // pred_check
      _
    $region31: #{tpu_custom_call.1} parent=1 // pred_check_branch
      %35 = sbr.rel (0) target = $region33
    $region32: #{tpu_custom_call.1} parent=1 // pred_region
      _
    $region33: #{tpu_custom_call.1} parent=1 // pred_fallthru
      _
    // Predicated region
    $region34: #{tpu_custom_call.1} parent=1 // pred_check
      _
    $region35: #{tpu_custom_call.1} parent=1 // pred_check_branch
      %37 = sbr.rel (0) target = $region37
    $region36: #{tpu_custom_call.1} parent=1 // pred_region
      _
    $region37: #{tpu_custom_call.1} parent=1 // pred_fallthru
      _
    // Predicated region
    $region38: #{tpu_custom_call.1} parent=1 // pred_check
      _
    $region39: #{tpu_custom_call.1} parent=1 // pred_check_branch
      %39 = sbr.rel (0) target = $region41
    $region40: #{tpu_custom_call.1} parent=1 // pred_region
      _
    $region41: #{tpu_custom_call.1} parent=1 // pred_fallthru
      _
    // Predicated region
    $region42: #{tpu_custom_call.1} parent=1 // pred_check
      _
    $region43: #{tpu_custom_call.1} parent=1 // pred_check_branch
      %41 = sbr.rel (0) target = $region45
    $region44: #{tpu_custom_call.1} parent=1 // pred_region
      _
    $region45: #{tpu_custom_call.1} parent=1 // pred_fallthru
      _
    // Predicated region
    $region46: #{tpu_custom_call.1} parent=1 // pred_check
      _
    $region47: #{tpu_custom_call.1} parent=1 // pred_check_branch
      %43 = sbr.rel (0) target = $region49
    $region48: #{tpu_custom_call.1} parent=1 // pred_region
      _
    $region49: #{tpu_custom_call.1} parent=1 // pred_fallthru
      _
    // Predicated region
    $region50: #{tpu_custom_call.1} parent=1 // pred_check
      _
    $region51: #{tpu_custom_call.1} parent=1 // pred_check_branch
      %45 = sbr.rel (0) target = $region53
    $region52: #{tpu_custom_call.1} parent=1 // pred_region
      _
    $region53: #{tpu_custom_call.1} parent=1 // pred_fallthru
      _
    // Predicated region
    $region54: #{tpu_custom_call.1} parent=1 // pred_check
      _
    $region55: #{tpu_custom_call.1} parent=1 // pred_check_branch
      %47 = sbr.rel (0) target = $region57
    $region56: #{tpu_custom_call.1} parent=1 // pred_region
      _
    $region57: #{tpu_custom_call.1} parent=1 // pred_fallthru
      _
    %v49 = vld [vmem:[%s0] sm:$0xff]
    %v50 = vld [vmem:[%s12] sm:$0xff]
    %v51 = vld [vmem:[%s12 + $0x8] sm:$0xff]
    %v52 = vld [vmem:[%s12 + $0x10] sm:$0xff]
    %v53 = vld [vmem:[%s12 + $0x18] sm:$0xff]
    %v54 = vld [vmem:[%s12 + $0x20] sm:$0xff]
    %v55 = vld [vmem:[%s12 + $0x28] sm:$0xff]
    %v56 = vld [vmem:[%s12 + $0x30] sm:$0xff]
    %v57 = vld [vmem:[%s12 + $0x38] sm:$0xff]
    %vm58 = vcmask 523264
    %v60 = vsel %vm58, %v49, 0
    %62 = vmatprep.subr.mxu0 0.0
    %63 = vmatpush1.msra.mxu0 %v50
    %64 = vmatprep.subr.mxu0 0.0
    %65 = vmatpush1.msra.mxu0 %v51
    %66 = vmatprep.subr.mxu0 0.0
    %67 = vmatpush1.msra.mxu0 %v52
    %68 = vmatprep.subr.mxu0 0.0
    %69 = vmatpush1.msra.mxu0 %v53
    %70 = vmatprep.subr.mxu0 0.0
    %71 = vmatpush1.msra.mxu0 %v54
    %72 = vmatprep.subr.mxu0 0.0
    %73 = vmatpush1.msra.mxu0 %v55
    %74 = vmatprep.subr.mxu0 0.0
    %75 = vmatpush1.msra.mxu0 %v56
    %76 = vmatprep.subr.mxu0 0.0
    %77 = vmatpush1.msra.mxu0 %v57
    %78 = vmatprep.subr.mxu0 0.0
    %79 = vmatpush1.msra.mxu0 0.0
    %80 = vmatprep.subr.mxu0 0.0
    %81 = vmatpush1.msra.mxu0 0.0
    %82 = vmatprep.subr.mxu0 0.0
    %83 = vmatpush1.msra.mxu0 0.0
    %84 = vmatprep.subr.mxu0 0.0
    %85 = vmatpush1.msra.mxu0 0.0
    %86 = vmatprep.subr.mxu0 0.0
    %87 = vmatpush1.msra.mxu0 0.0
    %88 = vmatprep.subr.mxu0 0.0
    %89 = vmatpush1.msra.mxu0 0.0
    %90 = vmatprep.subr.mxu0 0.0
    %91 = vmatpush1.msra.mxu0 0.0
    %92 = vmatprep.subr.mxu0 0.0
    %93 = vmatpush1.msra.mxu0 0.0
    %94 = vmatprep.subr.mxu0 0.0
    %95 = vmatpush1.msra.mxu0 0.0
    %96 = vmatprep.subr.mxu0 0.0
    %97 = vmatpush1.msra.mxu0 0.0
    %98 = vmatprep.subr.mxu0 0.0
    %99 = vmatpush1.msra.mxu0 0.0
    %100 = vmatprep.subr.mxu0 0.0
    %101 = vmatpush1.msra.mxu0 0.0
    %102 = vmatprep.subr.mxu0 0.0
    %103 = vmatpush1.msra.mxu0 0.0
    %104 = vmatprep.subr.mxu0 0.0
    %105 = vmatpush1.msra.mxu0 0.0
    %106 = vmatprep.subr.mxu0 0.0
    %107 = vmatpush1.msra.mxu0 0.0
    %108 = vmatprep.subr.mxu0 0.0
    %109 = vmatpush1.msra.mxu0 0.0
    %110 = vmatprep.subr.mxu0 0.0
    %111 = vmatpush1.msra.mxu0 0.0
    %112 = vmatprep.subr.mxu0 0.0
    %113 = vmatpush1.msra.mxu0 0.0
    %114 = vmatprep.subr.mxu0 0.0
    %115 = vmatpush1.msra.mxu0 0.0
    %116 = vmatprep.subr.mxu0 0.0
    %117 = vmatpush1.msra.mxu0 0.0
    %118 = vmatprep.subr.mxu0 0.0
    %119 = vmatpush1.msra.mxu0 0.0
    %120 = vmatprep.subr.mxu0 0.0
    %121 = vmatpush1.msra.mxu0 0.0
    %122 = vmatprep.subr.mxu0 0.0
    %123 = vmatpush1.msra.mxu0 0.0
    %124 = vmatprep.subr.mxu0 0.0
    %125 = vmatpush1.msra.mxu0 0.0
    %126 = vmatprep.mubr.f32.mxu0 0.0
    %127 = vmatmul.mubr.f32.gmra.mrb[0].mxu0 %v60
    %v128 = vpop.f32.mrb[0].mxu0
    %v129 = vadd.f32 0.0, %v128
    %v130 = vpop.f32.mrb[0].mxu0
    %131 = vdwg.mxu0
    %v132 = vld [vmem:[%s13] sm:$0x3]
    %vm133 = vcmask 15360
    %v135 = vsel %vm133, %v129, 0
    %vm137 = vcmask 1041408
    %v139 = vsel %vm137, %v132, 0
    %141 = vmatprep.subr.mxu0 0.0
    %142 = vmatpush1.msra.mxu0 %v139
    %143 = vmatprep.subr.mxu0 0.0
    %144 = vmatpush1.msra.mxu0 0.0
    %145 = vmatprep.subr.mxu0 0.0
    %146 = vmatpush1.msra.mxu0 0.0
    %147 = vmatprep.subr.mxu0 0.0
    %148 = vmatpush1.msra.mxu0 0.0
    %149 = vmatprep.subr.mxu0 0.0
    %150 = vmatpush1.msra.mxu0 0.0
    %151 = vmatprep.subr.mxu0 0.0
    %152 = vmatpush1.msra.mxu0 0.0
    %153 = vmatprep.subr.mxu0 0.0
    %154 = vmatpush1.msra.mxu0 0.0
    %155 = vmatprep.subr.mxu0 0.0
    %156 = vmatpush1.msra.mxu0 0.0
    %157 = vmatprep.subr.mxu0 0.0
    %158 = vmatpush1.msra.mxu0 0.0
    %159 = vmatprep.subr.mxu0 0.0
    %160 = vmatpush1.msra.mxu0 0.0
    %161 = vmatprep.subr.mxu0 0.0
    %162 = vmatpush1.msra.mxu0 0.0
    %163 = vmatprep.subr.mxu0 0.0
    %164 = vmatpush1.msra.mxu0 0.0
    %165 = vmatprep.subr.mxu0 0.0
    %166 = vmatpush1.msra.mxu0 0.0
    %167 = vmatprep.subr.mxu0 0.0
    %168 = vmatpush1.msra.mxu0 0.0
    %169 = vmatprep.subr.mxu0 0.0
    %170 = vmatpush1.msra.mxu0 0.0
    %171 = vmatprep.subr.mxu0 0.0
    %172 = vmatpush1.msra.mxu0 0.0
    %173 = vmatprep.subr.mxu0 0.0
    %174 = vmatpush1.msra.mxu0 0.0
    %175 = vmatprep.subr.mxu0 0.0
    %176 = vmatpush1.msra.mxu0 0.0
    %177 = vmatprep.subr.mxu0 0.0
    %178 = vmatpush1.msra.mxu0 0.0
    %179 = vmatprep.subr.mxu0 0.0
    %180 = vmatpush1.msra.mxu0 0.0
    %181 = vmatprep.subr.mxu0 0.0
    %182 = vmatpush1.msra.mxu0 0.0
    %183 = vmatprep.subr.mxu0 0.0
    %184 = vmatpush1.msra.mxu0 0.0
    %185 = vmatprep.subr.mxu0 0.0
    %186 = vmatpush1.msra.mxu0 0.0
    %187 = vmatprep.subr.mxu0 0.0
    %188 = vmatpush1.msra.mxu0 0.0
    %189 = vmatprep.subr.mxu0 0.0
    %190 = vmatpush1.msra.mxu0 0.0
    %191 = vmatprep.subr.mxu0 0.0
    %192 = vmatpush1.msra.mxu0 0.0
    %193 = vmatprep.subr.mxu0 0.0
    %194 = vmatpush1.msra.mxu0 0.0
    %195 = vmatprep.subr.mxu0 0.0
    %196 = vmatpush1.msra.mxu0 0.0
    %197 = vmatprep.subr.mxu0 0.0
    %198 = vmatpush1.msra.mxu0 0.0
    %199 = vmatprep.subr.mxu0 0.0
    %200 = vmatpush1.msra.mxu0 0.0
    %201 = vmatprep.subr.mxu0 0.0
    %202 = vmatpush1.msra.mxu0 0.0
    %203 = vmatprep.subr.mxu0 0.0
    %204 = vmatpush1.msra.mxu0 0.0
    %205 = vmatprep.mubr.f32.mxu0 0.0
    %206 = vmatmul.mubr.f32.gmra.mrb[0].mxu0 %v135
    %v207 = vpop.f32.mrb[0].mxu0
    %v208 = vadd.f32 0.0, %v207
    %v209 = vpop.f32.mrb[0].mxu0
    %210 = vdwg.mxu0
    %v211 = vsub.f32 %v49, %v208
    %v212 = vmul.f32 %v211, %v211
    %v214 = vsel %vm58, %v212, 0
    %216 = vmatprep.subr.mxu0 0.0
    %217 = vmatpush1.msra.mxu0 %v50
    %218 = vmatprep.subr.mxu0 0.0
    %219 = vmatpush1.msra.mxu0 %v51
    %220 = vmatprep.subr.mxu0 0.0
    %221 = vmatpush1.msra.mxu0 %v52
    %222 = vmatprep.subr.mxu0 0.0
    %223 = vmatpush1.msra.mxu0 %v53
    %224 = vmatprep.subr.mxu0 0.0
    %225 = vmatpush1.msra.mxu0 %v54
    %226 = vmatprep.subr.mxu0 0.0
    %227 = vmatpush1.msra.mxu0 %v55
    %228 = vmatprep.subr.mxu0 0.0
    %229 = vmatpush1.msra.mxu0 %v56
    %230 = vmatprep.subr.mxu0 0.0
    %231 = vmatpush1.msra.mxu0 %v57
    %232 = vmatprep.subr.mxu0 0.0
    %233 = vmatpush1.msra.mxu0 0.0
    %234 = vmatprep.subr.mxu0 0.0
    %235 = vmatpush1.msra.mxu0 0.0
    %236 = vmatprep.subr.mxu0 0.0
    %237 = vmatpush1.msra.mxu0 0.0
    %238 = vmatprep.subr.mxu0 0.0
    %239 = vmatpush1.msra.mxu0 0.0
    %240 = vmatprep.subr.mxu0 0.0
    %241 = vmatpush1.msra.mxu0 0.0
    %242 = vmatprep.subr.mxu0 0.0
    %243 = vmatpush1.msra.mxu0 0.0
    %244 = vmatprep.subr.mxu0 0.0
    %245 = vmatpush1.msra.mxu0 0.0
    %246 = vmatprep.subr.mxu0 0.0
    %247 = vmatpush1.msra.mxu0 0.0
    %248 = vmatprep.subr.mxu0 0.0
    %249 = vmatpush1.msra.mxu0 0.0
    %250 = vmatprep.subr.mxu0 0.0
    %251 = vmatpush1.msra.mxu0 0.0
    %252 = vmatprep.subr.mxu0 0.0
    %253 = vmatpush1.msra.mxu0 0.0
    %254 = vmatprep.subr.mxu0 0.0
    %255 = vmatpush1.msra.mxu0 0.0
    %256 = vmatprep.subr.mxu0 0.0
    %257 = vmatpush1.msra.mxu0 0.0
    %258 = vmatprep.subr.mxu0 0.0
    %259 = vmatpush1.msra.mxu0 0.0
    %260 = vmatprep.subr.mxu0 0.0
    %261 = vmatpush1.msra.mxu0 0.0
    %262 = vmatprep.subr.mxu0 0.0
    %263 = vmatpush1.msra.mxu0 0.0
    %264 = vmatprep.subr.mxu0 0.0
    %265 = vmatpush1.msra.mxu0 0.0
    %266 = vmatprep.subr.mxu0 0.0
    %267 = vmatpush1.msra.mxu0 0.0
    %268 = vmatprep.subr.mxu0 0.0
    %269 = vmatpush1.msra.mxu0 0.0
    %270 = vmatprep.subr.mxu0 0.0
    %271 = vmatpush1.msra.mxu0 0.0
    %272 = vmatprep.subr.mxu0 0.0
    %273 = vmatpush1.msra.mxu0 0.0
    %274 = vmatprep.subr.mxu0 0.0
    %275 = vmatpush1.msra.mxu0 0.0
    %276 = vmatprep.subr.mxu0 0.0
    %277 = vmatpush1.msra.mxu0 0.0
    %278 = vmatprep.subr.mxu0 0.0
    %279 = vmatpush1.msra.mxu0 0.0
    %280 = vmatprep.mubr.f32.mxu0 0.0
    %281 = vmatmul.mubr.f32.gmra.mrb[0].mxu0 %v214
    %v282 = vpop.f32.mrb[0].mxu0
    %v283 = vadd.f32 0.0, %v282
    %v284 = vpop.f32.mrb[0].mxu0
    %285 = vdwg.mxu0
    %v287 = vsel %vm133, %v283, 0
    %289 = vmatprep.subr.mxu0 0.0
    %290 = vmatpush1.msra.mxu0 %v139
    %291 = vmatprep.subr.mxu0 0.0
    %292 = vmatpush1.msra.mxu0 0.0
    %293 = vmatprep.subr.mxu0 0.0
    %294 = vmatpush1.msra.mxu0 0.0
    %295 = vmatprep.subr.mxu0 0.0
    %296 = vmatpush1.msra.mxu0 0.0
    %297 = vmatprep.subr.mxu0 0.0
    %298 = vmatpush1.msra.mxu0 0.0
    %299 = vmatprep.subr.mxu0 0.0
    %300 = vmatpush1.msra.mxu0 0.0
    %301 = vmatprep.subr.mxu0 0.0
    %302 = vmatpush1.msra.mxu0 0.0
    %303 = vmatprep.subr.mxu0 0.0
    %304 = vmatpush1.msra.mxu0 0.0
    %305 = vmatprep.subr.mxu0 0.0
    %306 = vmatpush1.msra.mxu0 0.0
    %307 = vmatprep.subr.mxu0 0.0
    %308 = vmatpush1.msra.mxu0 0.0
    %309 = vmatprep.subr.mxu0 0.0
    %310 = vmatpush1.msra.mxu0 0.0
    %311 = vmatprep.subr.mxu0 0.0
    %312 = vmatpush1.msra.mxu0 0.0
    %313 = vmatprep.subr.mxu0 0.0
    %314 = vmatpush1.msra.mxu0 0.0
    %315 = vmatprep.subr.mxu0 0.0
    %316 = vmatpush1.msra.mxu0 0.0
    %317 = vmatprep.subr.mxu0 0.0
    %318 = vmatpush1.msra.mxu0 0.0
    %319 = vmatprep.subr.mxu0 0.0
    %320 = vmatpush1.msra.mxu0 0.0
    %321 = vmatprep.subr.mxu0 0.0
    %322 = vmatpush1.msra.mxu0 0.0
    %323 = vmatprep.subr.mxu0 0.0
    %324 = vmatpush1.msra.mxu0 0.0
    %325 = vmatprep.subr.mxu0 0.0
    %326 = vmatpush1.msra.mxu0 0.0
    %327 = vmatprep.subr.mxu0 0.0
    %328 = vmatpush1.msra.mxu0 0.0
    %329 = vmatprep.subr.mxu0 0.0
    %330 = vmatpush1.msra.mxu0 0.0
    %331 = vmatprep.subr.mxu0 0.0
    %332 = vmatpush1.msra.mxu0 0.0
    %333 = vmatprep.subr.mxu0 0.0
    %334 = vmatpush1.msra.mxu0 0.0
    %335 = vmatprep.subr.mxu0 0.0
    %336 = vmatpush1.msra.mxu0 0.0
    %337 = vmatprep.subr.mxu0 0.0
    %338 = vmatpush1.msra.mxu0 0.0
    %339 = vmatprep.subr.mxu0 0.0
    %340 = vmatpush1.msra.mxu0 0.0
    %341 = vmatprep.subr.mxu0 0.0
    %342 = vmatpush1.msra.mxu0 0.0
    %343 = vmatprep.subr.mxu0 0.0
    %344 = vmatpush1.msra.mxu0 0.0
    %345 = vmatprep.subr.mxu0 0.0
    %346 = vmatpush1.msra.mxu0 0.0
    %347 = vmatprep.subr.mxu0 0.0
    %348 = vmatpush1.msra.mxu0 0.0
    %349 = vmatprep.subr.mxu0 0.0
    %350 = vmatpush1.msra.mxu0 0.0
    %351 = vmatprep.subr.mxu0 0.0
    %352 = vmatpush1.msra.mxu0 0.0
    %353 = vmatprep.mubr.f32.mxu0 0.0
    %354 = vmatmul.mubr.f32.gmra.mrb[0].mxu0 %v287
    %v355 = vpop.f32.mrb[0].mxu0
    %v356 = vadd.f32 1e-05, %v355
    %v357 = vpop.f32.mrb[0].mxu0
    %358 = vdwg.mxu0
    %v359 = vrsqrt.pop %v356
    %v360 = vmul.f32 %v211, %v359
    %v361 = vld [vmem:[%s1] sm:$0x1]
    %v363 = vlaneseq
    %v364 = vshrl.u32 %v363, 7
    %v365 = vsub.s32 0, %v364
    %v366 = vrot.slane %v361, %v365
    %v368 = vmul.f32 %v360, %v366
    %v369 = vld [vmem:[%s2] sm:$0x1]
    %v371 = vlaneseq
    %v372 = vshrl.u32 %v371, 7
    %v373 = vsub.s32 0, %v372
    %v374 = vrot.slane %v369, %v373
    %v376 = vadd.f32 %v368, %v374
    %v377 = vpack.c.bf16 %v376, %v376
    %v378 = vsel %vm58, %v376, 0.0
    %v379 = vrot.slane %v378, 4
    %v380 = vadd.f32 %v378, %v379
    %v381 = vrot.slane %v380, 2
    %v382 = vadd.f32 %v380, %v381
    %v383 = vrot.slane %v382, 1
    %v384 = vadd.f32 %v382, %v383
    %v385 = vrcp.pop 8.0
    %v386 = vmul.f32 %v384, %v385
    %388 = vrot.lane.b32.xlu0 %v386, 96
    %v389 = vpop.permute.xlu0 %388
    %vm391 = vcmask 1040384
    %v392 = vsel %vm391, %v386, %v389
    %v393 = vpack.c.bf16 %v392, %v392
    %v394 = vld [vmem:[%s3] sm:$0xf]
    %v395 = vld [vmem:[%s3 + $0x4] sm:$0xf]
    %v396 = vld [vmem:[%s3 + $0x8] sm:$0xf]
    %v397 = vld [vmem:[%s3 + $0xc] sm:$0xf]
    %v398 = vld [vmem:[%s4] sm:$0x1]
    %v400 = vlaneseq
    %v401 = vshrl.u32 %v400, 7
    %v402 = vsub.s32 0, %v401
    %v403 = vrot.slane %v398, %v402
    %v409 = vunpack.c.l.b16 %v394
    %v410 = vunpack.c.l.b16 %v395
    %v411 = vunpack.c.l.b16 %v396
    %v412 = vunpack.c.l.b16 %v397
    %v413 = vpack.c.b16 %v410, %v409
    %v414 = vpack.c.b16 %v412, %v411
    %vm417 = vcmask 261120
    %v419 = vsel %vm417, %v393, 0
    %421 = vmatprep.subr.bf16.mxu0 0
    %422 = vmatpush1.bf16.msra.mxu0 %v413
    %423 = vmatprep.subr.bf16.mxu0 0
    %424 = vmatpush1.bf16.msra.mxu0 %v414
    %425 = vmatprep.subr.bf16.mxu0 0
    %426 = vmatpush1.bf16.msra.mxu0 0
    %427 = vmatprep.subr.bf16.mxu0 0
    %428 = vmatpush1.bf16.msra.mxu0 0
    %429 = vmatprep.subr.bf16.mxu0 0
    %430 = vmatpush1.bf16.msra.mxu0 0
    %431 = vmatprep.subr.bf16.mxu0 0
    %432 = vmatpush1.bf16.msra.mxu0 0
    %433 = vmatprep.subr.bf16.mxu0 0
    %434 = vmatpush1.bf16.msra.mxu0 0
    %435 = vmatprep.subr.bf16.mxu0 0
    %436 = vmatpush1.bf16.msra.mxu0 0
    %437 = vmatprep.subr.bf16.mxu0 0
    %438 = vmatpush1.bf16.msra.mxu0 0
    %439 = vmatprep.subr.bf16.mxu0 0
    %440 = vmatpush1.bf16.msra.mxu0 0
    %441 = vmatprep.subr.bf16.mxu0 0
    %442 = vmatpush1.bf16.msra.mxu0 0
    %443 = vmatprep.subr.bf16.mxu0 0
    %444 = vmatpush1.bf16.msra.mxu0 0
    %445 = vmatprep.subr.bf16.mxu0 0
    %446 = vmatpush1.bf16.msra.mxu0 0
    %447 = vmatprep.subr.bf16.mxu0 0
    %448 = vmatpush1.bf16.msra.mxu0 0
    %449 = vmatprep.subr.bf16.mxu0 0
    %450 = vmatpush1.bf16.msra.mxu0 0
    %451 = vmatprep.subr.bf16.mxu0 0
    %452 = vmatpush1.bf16.msra.mxu0 0
    %453 = vmatprep.mubr.bf16.mxu0 0
    %454 = vmatmul.mubr.bf16.gmra.mrb[0].mxu0 %v419
    %v455 = vpop.f32.mrb[0].mxu0
    %v456 = vadd.f32 %v403, %v455
    %v457 = vpop.f32.mrb[0].mxu0
    %v458 = vpop.f32.mrb[0].mxu0
    %v459 = vpop.f32.mrb[0].mxu0
    %460 = vdwg.mxu0
    %v461 = vmul.f32 %v456, 0.5
    %v462 = vmul.f32 %v456, 0.70710677
    %v463 = verf.f32.pop %v462
    %v464 = vadd.f32 %v463, 1.0
    %v465 = vmul.f32 %v461, %v464
    %v466 = vpack.c.bf16 %v465, %v465
    %v467 = vld [vmem:[%s5] sm:$0xf]
    %v468 = vld [vmem:[%s5 + $0x4] sm:$0xf]
    %v469 = vld [vmem:[%s5 + $0x8] sm:$0xf]
    %v470 = vld [vmem:[%s5 + $0xc] sm:$0xf]
    %v471 = vld [vmem:[%s6] sm:$0x1]
    %v473 = vlaneseq
    %v474 = vshrl.u32 %v473, 7
    %v475 = vsub.s32 0, %v474
    %v476 = vrot.slane %v471, %v475
    %v482 = vunpack.c.l.b16 %v467
    %v483 = vunpack.c.l.b16 %v468
    %v484 = vunpack.c.l.b16 %v469
    %v485 = vunpack.c.l.b16 %v470
    %v486 = vpack.c.b16 %v483, %v482
    %v487 = vpack.c.b16 %v485, %v484
    %v491 = vsel %vm417, %v466, 0
    %493 = vmatprep.subr.bf16.mxu0 0
    %494 = vmatpush1.bf16.msra.mxu0 %v486
    %495 = vmatprep.subr.bf16.mxu0 0
    %496 = vmatpush1.bf16.msra.mxu0 %v487
    %497 = vmatprep.subr.bf16.mxu0 0
    %498 = vmatpush1.bf16.msra.mxu0 0
    %499 = vmatprep.subr.bf16.mxu0 0
    %500 = vmatpush1.bf16.msra.mxu0 0
    %501 = vmatprep.subr.bf16.mxu0 0
    %502 = vmatpush1.bf16.msra.mxu0 0
    %503 = vmatprep.subr.bf16.mxu0 0
    %504 = vmatpush1.bf16.msra.mxu0 0
    %505 = vmatprep.subr.bf16.mxu0 0
    %506 = vmatpush1.bf16.msra.mxu0 0
    %507 = vmatprep.subr.bf16.mxu0 0
    %508 = vmatpush1.bf16.msra.mxu0 0
    %509 = vmatprep.subr.bf16.mxu0 0
    %510 = vmatpush1.bf16.msra.mxu0 0
    %511 = vmatprep.subr.bf16.mxu0 0
    %512 = vmatpush1.bf16.msra.mxu0 0
    %513 = vmatprep.subr.bf16.mxu0 0
    %514 = vmatpush1.bf16.msra.mxu0 0
    %515 = vmatprep.subr.bf16.mxu0 0
    %516 = vmatpush1.bf16.msra.mxu0 0
    %517 = vmatprep.subr.bf16.mxu0 0
    %518 = vmatpush1.bf16.msra.mxu0 0
    %519 = vmatprep.subr.bf16.mxu0 0
    %520 = vmatpush1.bf16.msra.mxu0 0
    %521 = vmatprep.subr.bf16.mxu0 0
    %522 = vmatpush1.bf16.msra.mxu0 0
    %523 = vmatprep.subr.bf16.mxu0 0
    %524 = vmatpush1.bf16.msra.mxu0 0
    %525 = vmatprep.mubr.bf16.mxu0 0
    %526 = vmatmul.mubr.bf16.gmra.mrb[0].mxu0 %v491
    %v527 = vpop.f32.mrb[0].mxu0
    %v528 = vadd.f32 %v476, %v527
    %v529 = vpop.f32.mrb[0].mxu0
    %v530 = vpop.f32.mrb[0].mxu0
    %v531 = vpop.f32.mrb[0].mxu0
    %532 = vdwg.mxu0
    %v533 = vld [vmem:[%s7] sm:$0x1]
    %v534 = vadd.f32 %v528, 1.0
    %v536 = vlaneseq
    %v537 = vshrl.u32 %v536, 7
    %v538 = vsub.s32 0, %v537
    %v539 = vrot.slane %v533, %v538
    %v541 = vmul.f32 %v539, %v534
    %v542 = vld [vmem:[%s8] sm:$0x1]
    %v544 = vlaneseq
    %v545 = vshrl.u32 %v544, 7
    %v546 = vsub.s32 0, %v545
    %v547 = vrot.slane %v542, %v546
    %550 = vrot.lane.b32.xlu0 %v528, 96
    %v551 = vpop.permute.xlu0 %550
    %v553 = vadd.f32 %v547, %v551
    %554 = vxpose.xlu0.b32.start [1/16] %v541, 128
    %555 = vxpose.xlu0.b32.cont [2/16] 0.0, 128
    %556 = vxpose.xlu0.b32.cont [3/16] 0.0, 128
    %557 = vxpose.xlu0.b32.cont [4/16] 0.0, 128
    %558 = vxpose.xlu0.b32.cont [5/16] 0.0, 128
    %559 = vxpose.xlu0.b32.cont [6/16] 0.0, 128
    %560 = vxpose.xlu0.b32.cont [7/16] 0.0, 128
    %561 = vxpose.xlu0.b32.cont [8/16] 0.0, 128
    %562 = vxpose.xlu0.b32.cont [9/16] 0.0, 128
    %563 = vxpose.xlu0.b32.cont [10/16] 0.0, 128
    %564 = vxpose.xlu0.b32.cont [11/16] 0.0, 128
    %565 = vxpose.xlu0.b32.cont [12/16] 0.0, 128
    %566 = vxpose.xlu0.b32.cont [13/16] 0.0, 128
    %567 = vxpose.xlu0.b32.cont [14/16] 0.0, 128
    %568 = vxpose.xlu0.b32.cont [15/16] 0.0, 128
    %569 = vxpose.xlu0.b32.end [16/16] 0.0, 128
    %v570 = vpop.trf.xlu0
    %v571 = vpop.trf.xlu0
    %v572 = vpop.trf.xlu0
    %v573 = vpop.trf.xlu0
    %v574 = vpop.trf.xlu0
    %v575 = vpop.trf.xlu0
    %v576 = vpop.trf.xlu0
    %v577 = vpop.trf.xlu0
    %v578 = vpop.trf.xlu0
    %v579 = vpop.trf.xlu0
    %v580 = vpop.trf.xlu0
    %v581 = vpop.trf.xlu0
    %v582 = vpop.trf.xlu0
    %v583 = vpop.trf.xlu0
    %v584 = vpop.trf.xlu0
    %v585 = vpop.trf.xlu0
    %586 = vxpose.xlu0.b32.start [1/16] %v553, 128
    %587 = vxpose.xlu0.b32.cont [2/16] 0.0, 128
    %588 = vxpose.xlu0.b32.cont [3/16] 0.0, 128
    %589 = vxpose.xlu0.b32.cont [4/16] 0.0, 128
    %590 = vxpose.xlu0.b32.cont [5/16] 0.0, 128
    %591 = vxpose.xlu0.b32.cont [6/16] 0.0, 128
    %592 = vxpose.xlu0.b32.cont [7/16] 0.0, 128
    %593 = vxpose.xlu0.b32.cont [8/16] 0.0, 128
    %594 = vxpose.xlu0.b32.cont [9/16] 0.0, 128
    %595 = vxpose.xlu0.b32.cont [10/16] 0.0, 128
    %596 = vxpose.xlu0.b32.cont [11/16] 0.0, 128
    %597 = vxpose.xlu0.b32.cont [12/16] 0.0, 128
    %598 = vxpose.xlu0.b32.cont [13/16] 0.0, 128
    %599 = vxpose.xlu0.b32.cont [14/16] 0.0, 128
    %600 = vxpose.xlu0.b32.cont [15/16] 0.0, 128
    %601 = vxpose.xlu0.b32.end [16/16] 0.0, 128
    %v602 = vpop.trf.xlu0
    %v603 = vpop.trf.xlu0
    %v604 = vpop.trf.xlu0
    %v605 = vpop.trf.xlu0
    %v606 = vpop.trf.xlu0
    %v607 = vpop.trf.xlu0
    %v608 = vpop.trf.xlu0
    %v609 = vpop.trf.xlu0
    %v610 = vpop.trf.xlu0
    %v611 = vpop.trf.xlu0
    %v612 = vpop.trf.xlu0
    %v613 = vpop.trf.xlu0
    %v614 = vpop.trf.xlu0
    %v615 = vpop.trf.xlu0
    %v616 = vpop.trf.xlu0
    %v617 = vpop.trf.xlu0
    %619 = vrot.lane.b32.xlu0 %v571, 2
    %v620 = vpop.permute.xlu0 %619
    %623 = vrot.lane.b32.xlu0 %v572, 4
    %v624 = vpop.permute.xlu0 %623
    %627 = vrot.lane.b32.xlu0 %v573, 6
    %v628 = vpop.permute.xlu0 %627
    %v630 = vsel %vm133, %v570, %v620
    %vm631 = vcmask 31744
    %v632 = vsel %vm631, %v630, %v624
    %vm633 = vcmask 48128
    %v634 = vsel %vm633, %v632, %v628
    %636 = vrot.lane.b32.xlu0 %v603, 2
    %v637 = vpop.permute.xlu0 %636
    %640 = vrot.lane.b32.xlu0 %v604, 4
    %v641 = vpop.permute.xlu0 %640
    %644 = vrot.lane.b32.xlu0 %v605, 6
    %v645 = vpop.permute.xlu0 %644
    %v647 = vsel %vm133, %v602, %v637
    %v648 = vsel %vm631, %v647, %v641
    %v649 = vsel %vm633, %v648, %v645
    %v650 = vld [vmem:[%s11] sm:$0xff]
    %vm651 = vcmask 64512
    %v653 = vsel %vm651, %v634, 0
    %655 = vmatprep.subr.mxu0 0.0
    %656 = vmatpush1.msra.mxu0 %v650
    %657 = vmatprep.subr.mxu0 0.0
    %658 = vmatpush1.msra.mxu0 0.0
    %659 = vmatprep.subr.mxu0 0.0
    %660 = vmatpush1.msra.mxu0 0.0
    %661 = vmatprep.subr.mxu0 0.0
    %662 = vmatpush1.msra.mxu0 0.0
    %663 = vmatprep.subr.mxu0 0.0
    %664 = vmatpush1.msra.mxu0 0.0
    %665 = vmatprep.subr.mxu0 0.0
    %666 = vmatpush1.msra.mxu0 0.0
    %667 = vmatprep.subr.mxu0 0.0
    %668 = vmatpush1.msra.mxu0 0.0
    %669 = vmatprep.subr.mxu0 0.0
    %670 = vmatpush1.msra.mxu0 0.0
    %671 = vmatprep.subr.mxu0 0.0
    %672 = vmatpush1.msra.mxu0 0.0
    %673 = vmatprep.subr.mxu0 0.0
    %674 = vmatpush1.msra.mxu0 0.0
    %675 = vmatprep.subr.mxu0 0.0
    %676 = vmatpush1.msra.mxu0 0.0
    %677 = vmatprep.subr.mxu0 0.0
    %678 = vmatpush1.msra.mxu0 0.0
    %679 = vmatprep.subr.mxu0 0.0
    %680 = vmatpush1.msra.mxu0 0.0
    %681 = vmatprep.subr.mxu0 0.0
    %682 = vmatpush1.msra.mxu0 0.0
    %683 = vmatprep.subr.mxu0 0.0
    %684 = vmatpush1.msra.mxu0 0.0
    %685 = vmatprep.subr.mxu0 0.0
    %686 = vmatpush1.msra.mxu0 0.0
    %687 = vmatprep.subr.mxu0 0.0
    %688 = vmatpush1.msra.mxu0 0.0
    %689 = vmatprep.subr.mxu0 0.0
    %690 = vmatpush1.msra.mxu0 0.0
    %691 = vmatprep.subr.mxu0 0.0
    %692 = vmatpush1.msra.mxu0 0.0
    %693 = vmatprep.subr.mxu0 0.0
    %694 = vmatpush1.msra.mxu0 0.0
    %695 = vmatprep.subr.mxu0 0.0
    %696 = vmatpush1.msra.mxu0 0.0
    %697 = vmatprep.subr.mxu0 0.0
    %698 = vmatpush1.msra.mxu0 0.0
    %699 = vmatprep.subr.mxu0 0.0
    %700 = vmatpush1.msra.mxu0 0.0
    %701 = vmatprep.subr.mxu0 0.0
    %702 = vmatpush1.msra.mxu0 0.0
    %703 = vmatprep.subr.mxu0 0.0
    %704 = vmatpush1.msra.mxu0 0.0
    %705 = vmatprep.subr.mxu0 0.0
    %706 = vmatpush1.msra.mxu0 0.0
    %707 = vmatprep.subr.mxu0 0.0
    %708 = vmatpush1.msra.mxu0 0.0
    %709 = vmatprep.subr.mxu0 0.0
    %710 = vmatpush1.msra.mxu0 0.0
    %711 = vmatprep.subr.mxu0 0.0
    %712 = vmatpush1.msra.mxu0 0.0
    %713 = vmatprep.subr.mxu0 0.0
    %714 = vmatpush1.msra.mxu0 0.0
    %715 = vmatprep.subr.mxu0 0.0
    %716 = vmatpush1.msra.mxu0 0.0
    %717 = vmatprep.subr.mxu0 0.0
    %718 = vmatpush1.msra.mxu0 0.0
    %719 = vmatprep.mubr.f32.mxu0 0.0
    %720 = vmatmul.mubr.f32.gmra.mrb[0].mxu0 %v653
    %v721 = vpop.f32.mrb[0].mxu0
    %v722 = vadd.f32 0.0, %v721
    %v723 = vpop.f32.mrb[0].mxu0
    %724 = vdwg.mxu0
    %v726 = vsel %vm651, %v649, 0
    %728 = vmatprep.subr.mxu0 0.0
    %729 = vmatpush1.msra.mxu0 %v650
    %730 = vmatprep.subr.mxu0 0.0
    %731 = vmatpush1.msra.mxu0 0.0
    %732 = vmatprep.subr.mxu0 0.0
    %733 = vmatpush1.msra.mxu0 0.0
    %734 = vmatprep.subr.mxu0 0.0
    %735 = vmatpush1.msra.mxu0 0.0
    %736 = vmatprep.subr.mxu0 0.0
    %737 = vmatpush1.msra.mxu0 0.0
    %738 = vmatprep.subr.mxu0 0.0
    %739 = vmatpush1.msra.mxu0 0.0
    %740 = vmatprep.subr.mxu0 0.0
    %741 = vmatpush1.msra.mxu0 0.0
    %742 = vmatprep.subr.mxu0 0.0
    %743 = vmatpush1.msra.mxu0 0.0
    %744 = vmatprep.subr.mxu0 0.0
    %745 = vmatpush1.msra.mxu0 0.0
    %746 = vmatprep.subr.mxu0 0.0
    %747 = vmatpush1.msra.mxu0 0.0
    %748 = vmatprep.subr.mxu0 0.0
    %749 = vmatpush1.msra.mxu0 0.0
    %750 = vmatprep.subr.mxu0 0.0
    %751 = vmatpush1.msra.mxu0 0.0
    %752 = vmatprep.subr.mxu0 0.0
    %753 = vmatpush1.msra.mxu0 0.0
    %754 = vmatprep.subr.mxu0 0.0
    %755 = vmatpush1.msra.mxu0 0.0
    %756 = vmatprep.subr.mxu0 0.0
    %757 = vmatpush1.msra.mxu0 0.0
    %758 = vmatprep.subr.mxu0 0.0
    %759 = vmatpush1.msra.mxu0 0.0
    %760 = vmatprep.subr.mxu0 0.0
    %761 = vmatpush1.msra.mxu0 0.0
    %762 = vmatprep.subr.mxu0 0.0
    %763 = vmatpush1.msra.mxu0 0.0
    %764 = vmatprep.subr.mxu0 0.0
    %765 = vmatpush1.msra.mxu0 0.0
    %766 = vmatprep.subr.mxu0 0.0
    %767 = vmatpush1.msra.mxu0 0.0
    %768 = vmatprep.subr.mxu0 0.0
    %769 = vmatpush1.msra.mxu0 0.0
    %770 = vmatprep.subr.mxu0 0.0
    %771 = vmatpush1.msra.mxu0 0.0
    %772 = vmatprep.subr.mxu0 0.0
    %773 = vmatpush1.msra.mxu0 0.0
    %774 = vmatprep.subr.mxu0 0.0
    %775 = vmatpush1.msra.mxu0 0.0
    %776 = vmatprep.subr.mxu0 0.0
    %777 = vmatpush1.msra.mxu0 0.0
    %778 = vmatprep.subr.mxu0 0.0
    %779 = vmatpush1.msra.mxu0 0.0
    %780 = vmatprep.subr.mxu0 0.0
    %781 = vmatpush1.msra.mxu0 0.0
    %782 = vmatprep.subr.mxu0 0.0
    %783 = vmatpush1.msra.mxu0 0.0
    %784 = vmatprep.subr.mxu0 0.0
    %785 = vmatpush1.msra.mxu0 0.0
    %786 = vmatprep.subr.mxu0 0.0
    %787 = vmatpush1.msra.mxu0 0.0
    %788 = vmatprep.subr.mxu0 0.0
    %789 = vmatpush1.msra.mxu0 0.0
    %790 = vmatprep.subr.mxu0 0.0
    %791 = vmatpush1.msra.mxu0 0.0
    %792 = vmatprep.mubr.f32.mxu0 0.0
    %793 = vmatmul.mubr.f32.gmra.mrb[0].mxu0 %v726
    %v794 = vpop.f32.mrb[0].mxu0
    %v795 = vadd.f32 0.0, %v794
    %v796 = vpop.f32.mrb[0].mxu0
    %797 = vdwg.mxu0
    %v798 = vld [vmem:[%s9] sm:$0xf]
    %v799 = vld [vmem:[%s9 + $0x4] sm:$0xf]
    %v802 = vunpack.c.l.b16 %v798
    %v803 = vunpack.c.l.b16 %v799
    %v804 = vpack.c.b16 %v803, %v802
    %v806 = vsel %vm651, %v804, 0
    %vm808 = vcmask 1043456
    %v810 = vsel %vm808, %v377, 0
    %812 = vmatprep.subr.bf16.mxu0 0
    %813 = vmatpush1.bf16.msra.mxu0 %v810
    %814 = vmatprep.subr.bf16.mxu0 0
    %815 = vmatpush1.bf16.msra.mxu0 0
    %816 = vmatprep.subr.bf16.mxu0 0
    %817 = vmatpush1.bf16.msra.mxu0 0
    %818 = vmatprep.subr.bf16.mxu0 0
    %819 = vmatpush1.bf16.msra.mxu0 0
    %820 = vmatprep.subr.bf16.mxu0 0
    %821 = vmatpush1.bf16.msra.mxu0 0
    %822 = vmatprep.subr.bf16.mxu0 0
    %823 = vmatpush1.bf16.msra.mxu0 0
    %824 = vmatprep.subr.bf16.mxu0 0
    %825 = vmatpush1.bf16.msra.mxu0 0
    %826 = vmatprep.subr.bf16.mxu0 0
    %827 = vmatpush1.bf16.msra.mxu0 0
    %828 = vmatprep.subr.bf16.mxu0 0
    %829 = vmatpush1.bf16.msra.mxu0 0
    %830 = vmatprep.subr.bf16.mxu0 0
    %831 = vmatpush1.bf16.msra.mxu0 0
    %832 = vmatprep.subr.bf16.mxu0 0
    %833 = vmatpush1.bf16.msra.mxu0 0
    %834 = vmatprep.subr.bf16.mxu0 0
    %835 = vmatpush1.bf16.msra.mxu0 0
    %836 = vmatprep.subr.bf16.mxu0 0
    %837 = vmatpush1.bf16.msra.mxu0 0
    %838 = vmatprep.subr.bf16.mxu0 0
    %839 = vmatpush1.bf16.msra.mxu0 0
    %840 = vmatprep.subr.bf16.mxu0 0
    %841 = vmatpush1.bf16.msra.mxu0 0
    %842 = vmatprep.subr.bf16.mxu0 0
    %843 = vmatpush1.bf16.msra.mxu0 0
    %844 = vmatprep.mubr.bf16.mxu0 0
    %845 = vmatmul.mubr.bf16.gmra.mrb[0].mxu0 %v806
    %v846 = vpop.f32.mrb[0].mxu0
    %v847 = vadd.f32 0.0, %v846
    %v848 = vpop.f32.mrb[0].mxu0
    %v849 = vpop.f32.mrb[0].mxu0
    %v850 = vadd.f32 0.0, %v849
    %v851 = vpop.f32.mrb[0].mxu0
    %852 = vdwg.mxu0
    %v853 = vmul.f32 %v847, %v722
    %v854 = vadd.f32 %v853, %v795
    %v855 = vmul.f32 %v850, %v722
    %v856 = vmul.f32 %v854, %v854
    %v857 = vmul.f32 %v855, %v855
    %v858 = vadd.f32 %v856, %v857
    %v859 = vrsqrt.pop %v858
    %v860 = vmul.f32 %v858, %v859
    %vm861 = vcmp.eq.f32.partialorder %v858, inf
    %v862 = vsel %vm861, %v858, %v860
    %vm863 = vcmp.eq.f32.partialorder %v858, 0.0
    %v864 = vand.u32 %v858, 2147483648
    %v865 = vsel %vm863, %v864, %v862
    %v866 = vmul.f32 %v865, 0.5
    %v867 = vmul.f32 %v865, 0.044715
    %v868 = vmul.f32 %v867, %v865
    %v869 = vmul.f32 %v868, %v865
    %v870 = vadd.f32 %v865, %v869
    %v871 = vmul.f32 %v870, 0.7978846
    %v872 = vtanh.pop %v871
    %v873 = vadd.f32 %v872, 1.0
    %v874 = vmul.f32 %v866, %v873
    %v875 = vadd.f32 %v865, 1e-06
    %v876 = vrcp.pop %v875
    %v877 = vmul.f32 %v874, %v876
    %v878 = vmul.f32 %v854, %v877
    %v879 = vpack.c.bf16 %v878, %v878
    %v880 = vmul.f32 %v855, %v877
    %v881 = vpack.c.bf16 %v880, %v880
    %v883 = vrot.slane %v881, 4
    %v886 = vsel %vm808, %v879, %v883
    %v888 = vld [vmem:[%s10] sm:$0xf]
    %vm889 = vcmask 130048
    %v891 = vsel %vm889, %v888, 0
    %893 = vmatprep.subr.bf16.mxu0 0
    %894 = vmatpush1.bf16.msra.mxu0 %v886
    %895 = vmatprep.subr.bf16.mxu0 0
    %896 = vmatpush1.bf16.msra.mxu0 0
    %897 = vmatprep.subr.bf16.mxu0 0
    %898 = vmatpush1.bf16.msra.mxu0 0
    %899 = vmatprep.subr.bf16.mxu0 0
    %900 = vmatpush1.bf16.msra.mxu0 0
    %901 = vmatprep.subr.bf16.mxu0 0
    %902 = vmatpush1.bf16.msra.mxu0 0
    %903 = vmatprep.subr.bf16.mxu0 0
    %904 = vmatpush1.bf16.msra.mxu0 0
    %905 = vmatprep.subr.bf16.mxu0 0
    %906 = vmatpush1.bf16.msra.mxu0 0
    %907 = vmatprep.subr.bf16.mxu0 0
    %908 = vmatpush1.bf16.msra.mxu0 0
    %909 = vmatprep.subr.bf16.mxu0 0
    %910 = vmatpush1.bf16.msra.mxu0 0
    %911 = vmatprep.subr.bf16.mxu0 0
    %912 = vmatpush1.bf16.msra.mxu0 0
    %913 = vmatprep.subr.bf16.mxu0 0
    %914 = vmatpush1.bf16.msra.mxu0 0
    %915 = vmatprep.subr.bf16.mxu0 0
    %916 = vmatpush1.bf16.msra.mxu0 0
    %917 = vmatprep.subr.bf16.mxu0 0
    %918 = vmatpush1.bf16.msra.mxu0 0
    %919 = vmatprep.subr.bf16.mxu0 0
    %920 = vmatpush1.bf16.msra.mxu0 0
    %921 = vmatprep.subr.bf16.mxu0 0
    %922 = vmatpush1.bf16.msra.mxu0 0
    %923 = vmatprep.subr.bf16.mxu0 0
    %924 = vmatpush1.bf16.msra.mxu0 0
    %925 = vmatprep.mubr.bf16.mxu0 0
    %926 = vmatmul.mubr.bf16.gmra.mrb[0].mxu0 %v891
    %v927 = vpop.f32.mrb[0].mxu0
    %v928 = vadd.f32 0.0, %v927
    %v929 = vpop.f32.mrb[0].mxu0
    %v930 = vpop.f32.mrb[0].mxu0
    %v931 = vpop.f32.mrb[0].mxu0
    %932 = vdwg.mxu0
    %v933 = vadd.f32 %v49, %v928
    %934 = vst.msk [vmem:[#allocation2] sm:$0xff] %vm58, %v933
    // Predicated region
    $region58: #{tpu_custom_call.1} parent=1 // pred_check
      _
    $region59: #{tpu_custom_call.1} parent=1 // pred_check_branch
      %936 = sbr.rel (0) target = $region61
    $region60: #{tpu_custom_call.1} parent=1 // pred_region
      %s938 = ssub.s32 128, 128
      %939 = vsyncadd [#allocation3], %s938
      %s941 = sshll.u32 [#allocation2], 4
      %s942 = int_to_ptr.vmem [resolvable:$true] %s941
      %944 = dma.vmem_to_hbm [thread:$0]  %s942, 128, %s14, [#allocation3]
    $region61: #{tpu_custom_call.1} parent=1 // pred_fallthru
      _
    // Predicated region
    $region62: #{tpu_custom_call.1} parent=1 // pred_check
      _
    $region63: #{tpu_custom_call.1} parent=1 // pred_check_branch
      %946 = sbr.rel (0) target = $region65
    $region64: #{tpu_custom_call.1} parent=1 // pred_region
      %947 = dma.done [#allocation3], 128
    $region65: #{tpu_custom_call.1} parent=1 // pred_fallthru
      _
    %948 = vsyncpa [#allocation3], 1

// kernel: tpu_custom_call.1
$region0: #{tpu_custom_call.1}
  #allocation0 [shape = 'u32[]', space=smem, size = 0x4, offset = 0x4, fixed_abs, tag = 'smem constant byte address 0x4 - core index']
  #allocation1 [shape = 'u32[144,128]{1,0:T(1,128)}', space=vmem, size = 0x12000, scoped, tag = 'internal scratch']
  %s0 = inlined_call_operand.vmem [shape: f32[8,64], index: 0, kind: input, shape index: {}]
  %s1 = inlined_call_operand.vmem [shape: f32[1,64], index: 1, kind: input, shape index: {}]
  %s2 = inlined_call_operand.vmem [shape: f32[1,64], index: 2, kind: input, shape index: {}]
  %s3 = inlined_call_operand.vmem [shape: bf16[32,32], index: 3, kind: input, shape index: {}]
  %s4 = inlined_call_operand.vmem [shape: f32[1,32], index: 4, kind: input, shape index: {}]
  %s5 = inlined_call_operand.vmem [shape: bf16[32,64], index: 5, kind: input, shape index: {}]
  %s6 = inlined_call_operand.vmem [shape: f32[1,64], index: 6, kind: input, shape index: {}]
  %s7 = inlined_call_operand.vmem [shape: f32[1,32], index: 7, kind: input, shape index: {}]
  %s8 = inlined_call_operand.vmem [shape: f32[1,32], index: 8, kind: input, shape index: {}]
  %s9 = inlined_call_operand.vmem [shape: bf16[16,8], index: 9, kind: input, shape index: {}]
  %s10 = inlined_call_operand.vmem [shape: bf16[8,16], index: 10, kind: input, shape index: {}]
  %s11 = inlined_call_operand.vmem [shape: f32[8,64], index: 11, kind: input, shape index: {}]
  %s12 = inlined_call_operand.vmem [shape: f32[64,2], index: 12, kind: input, shape index: {}]
  %s13 = inlined_call_operand.vmem [shape: f32[2,64], index: 13, kind: input, shape index: {}]
  %s14 = inlined_call_operand.hbm [shape: f32[8,64], index: 14, kind: output, shape index: {}]
  %s15 = sld [smem:[#allocation0]]
  $region66: #{tpu_custom_call.1} parent=0
    _
  %s17 = ssub.s32 1, %s15
  %s18 = scalar_select 0, %s17, %s15
  $region1: #{tpu_custom_call.1} parent=0
    #allocation2 [shape = 'u8[4096]{0}', space=vmem, size = 0x1000, scoped, tag = 'output window, operand 0, single buffered']
    #allocation3 [shape = 's32[1]{0}', space=sflag, size = 0x4, scoped, tag = 'scoped memory for tpu_custom_call.1']
    %19 = vsyncpa [#allocation3], 0
    // Predicated region
    $region2: #{tpu_custom_call.1} parent=1 // pred_check
      _
    $region3: #{tpu_custom_call.1} parent=1 // pred_check_branch
      %21 = sbr.rel (0) target = $region5
    $region4: #{tpu_custom_call.1} parent=1 // pred_region
      _
    $region5: #{tpu_custom_call.1} parent=1 // pred_fallthru
      _
    // Predicated region
    $region6: #{tpu_custom_call.1} parent=1 // pred_check
      _
    $region7: #{tpu_custom_call.1} parent=1 // pred_check_branch
      %23 = sbr.rel (0) target = $region9
    $region8: #{tpu_custom_call.1} parent=1 // pred_region
      _
    $region9: #{tpu_custom_call.1} parent=1 // pred_fallthru
      _
    // Predicated region
    $region10: #{tpu_custom_call.1} parent=1 // pred_check
      _
    $region11: #{tpu_custom_call.1} parent=1 // pred_check_branch
      %25 = sbr.rel (0) target = $region13
    $region12: #{tpu_custom_call.1} parent=1 // pred_region
      _
    $region13: #{tpu_custom_call.1} parent=1 // pred_fallthru
      _
    // Predicated region
    $region14: #{tpu_custom_call.1} parent=1 // pred_check
      _
    $region15: #{tpu_custom_call.1} parent=1 // pred_check_branch
      %27 = sbr.rel (0) target = $region17
    $region16: #{tpu_custom_call.1} parent=1 // pred_region
      _
    $region17: #{tpu_custom_call.1} parent=1 // pred_fallthru
      _
    // Predicated region
    $region18: #{tpu_custom_call.1} parent=1 // pred_check
      _
    $region19: #{tpu_custom_call.1} parent=1 // pred_check_branch
      %29 = sbr.rel (0) target = $region21
    $region20: #{tpu_custom_call.1} parent=1 // pred_region
      _
    $region21: #{tpu_custom_call.1} parent=1 // pred_fallthru
      _
    // Predicated region
    $region22: #{tpu_custom_call.1} parent=1 // pred_check
      _
    $region23: #{tpu_custom_call.1} parent=1 // pred_check_branch
      %31 = sbr.rel (0) target = $region25
    $region24: #{tpu_custom_call.1} parent=1 // pred_region
      _
    $region25: #{tpu_custom_call.1} parent=1 // pred_fallthru
      _
    // Predicated region
    $region26: #{tpu_custom_call.1} parent=1 // pred_check
      _
    $region27: #{tpu_custom_call.1} parent=1 // pred_check_branch
      %33 = sbr.rel (0) target = $region29
    $region28: #{tpu_custom_call.1} parent=1 // pred_region
      _
    $region29: #{tpu_custom_call.1} parent=1 // pred_fallthru
      _
    // Predicated region
    $region30: #{tpu_custom_call.1} parent=1 // pred_check
      _
    $region31: #{tpu_custom_call.1} parent=1 // pred_check_branch
      %35 = sbr.rel (0) target = $region33
    $region32: #{tpu_custom_call.1} parent=1 // pred_region
      _
    $region33: #{tpu_custom_call.1} parent=1 // pred_fallthru
      _
    // Predicated region
    $region34: #{tpu_custom_call.1} parent=1 // pred_check
      _
    $region35: #{tpu_custom_call.1} parent=1 // pred_check_branch
      %37 = sbr.rel (0) target = $region37
    $region36: #{tpu_custom_call.1} parent=1 // pred_region
      _
    $region37: #{tpu_custom_call.1} parent=1 // pred_fallthru
      _
    // Predicated region
    $region38: #{tpu_custom_call.1} parent=1 // pred_check
      _
    $region39: #{tpu_custom_call.1} parent=1 // pred_check_branch
      %39 = sbr.rel (0) target = $region41
    $region40: #{tpu_custom_call.1} parent=1 // pred_region
      _
    $region41: #{tpu_custom_call.1} parent=1 // pred_fallthru
      _
    // Predicated region
    $region42: #{tpu_custom_call.1} parent=1 // pred_check
      _
    $region43: #{tpu_custom_call.1} parent=1 // pred_check_branch
      %41 = sbr.rel (0) target = $region45
    $region44: #{tpu_custom_call.1} parent=1 // pred_region
      _
    $region45: #{tpu_custom_call.1} parent=1 // pred_fallthru
      _
    // Predicated region
    $region46: #{tpu_custom_call.1} parent=1 // pred_check
      _
    $region47: #{tpu_custom_call.1} parent=1 // pred_check_branch
      %43 = sbr.rel (0) target = $region49
    $region48: #{tpu_custom_call.1} parent=1 // pred_region
      _
    $region49: #{tpu_custom_call.1} parent=1 // pred_fallthru
      _
    // Predicated region
    $region50: #{tpu_custom_call.1} parent=1 // pred_check
      _
    $region51: #{tpu_custom_call.1} parent=1 // pred_check_branch
      %45 = sbr.rel (0) target = $region53
    $region52: #{tpu_custom_call.1} parent=1 // pred_region
      _
    $region53: #{tpu_custom_call.1} parent=1 // pred_fallthru
      _
    // Predicated region
    $region54: #{tpu_custom_call.1} parent=1 // pred_check
      _
    $region55: #{tpu_custom_call.1} parent=1 // pred_check_branch
      %47 = sbr.rel (0) target = $region57
    $region56: #{tpu_custom_call.1} parent=1 // pred_region
      _
    $region57: #{tpu_custom_call.1} parent=1 // pred_fallthru
      _
    %v49 = vld [vmem:[%s0] sm:$0xff]
    %v50 = vld [vmem:[%s12] sm:$0xff]
    %v51 = vld [vmem:[%s12 + $0x8] sm:$0xff]
    %v52 = vld [vmem:[%s12 + $0x10] sm:$0xff]
    %v53 = vld [vmem:[%s12 + $0x18] sm:$0xff]
    %v54 = vld [vmem:[%s12 + $0x20] sm:$0xff]
    %v55 = vld [vmem:[%s12 + $0x28] sm:$0xff]
    %v56 = vld [vmem:[%s12 + $0x30] sm:$0xff]
    %v57 = vld [vmem:[%s12 + $0x38] sm:$0xff]
    %vm58 = vcmask 523264
    %v60 = vsel %vm58, %v49, 0
    %62 = vmatprep.subr.mxu0 0.0
    %63 = vmatpush1.msra.mxu0 %v50
    %64 = vmatprep.subr.mxu0 0.0
    %65 = vmatpush1.msra.mxu0 %v51
    %66 = vmatprep.subr.mxu0 0.0
    %67 = vmatpush1.msra.mxu0 %v52
    %68 = vmatprep.subr.mxu0 0.0
    %69 = vmatpush1.msra.mxu0 %v53
    %70 = vmatprep.subr.mxu0 0.0
    %71 = vmatpush1.msra.mxu0 %v54
    %72 = vmatprep.subr.mxu0 0.0
    %73 = vmatpush1.msra.mxu0 %v55
    %74 = vmatprep.subr.mxu0 0.0
    %75 = vmatpush1.msra.mxu0 %v56
    %76 = vmatprep.subr.mxu0 0.0
    %77 = vmatpush1.msra.mxu0 %v57
    %78 = vmatprep.subr.mxu0 0.0
    %79 = vmatpush1.msra.mxu0 0.0
    %80 = vmatprep.subr.mxu0 0.0
    %81 = vmatpush1.msra.mxu0 0.0
    %82 = vmatprep.subr.mxu0 0.0
    %83 = vmatpush1.msra.mxu0 0.0
    %84 = vmatprep.subr.mxu0 0.0
    %85 = vmatpush1.msra.mxu0 0.0
    %86 = vmatprep.subr.mxu0 0.0
    %87 = vmatpush1.msra.mxu0 0.0
    %88 = vmatprep.subr.mxu0 0.0
    %89 = vmatpush1.msra.mxu0 0.0
    %90 = vmatprep.subr.mxu0 0.0
    %91 = vmatpush1.msra.mxu0 0.0
    %92 = vmatprep.subr.mxu0 0.0
    %93 = vmatpush1.msra.mxu0 0.0
    %94 = vmatprep.subr.mxu0 0.0
    %95 = vmatpush1.msra.mxu0 0.0
    %96 = vmatprep.subr.mxu0 0.0
    %97 = vmatpush1.msra.mxu0 0.0
    %98 = vmatprep.subr.mxu0 0.0
    %99 = vmatpush1.msra.mxu0 0.0
    %100 = vmatprep.subr.mxu0 0.0
    %101 = vmatpush1.msra.mxu0 0.0
    %102 = vmatprep.subr.mxu0 0.0
    %103 = vmatpush1.msra.mxu0 0.0
    %104 = vmatprep.subr.mxu0 0.0
    %105 = vmatpush1.msra.mxu0 0.0
    %106 = vmatprep.subr.mxu0 0.0
    %107 = vmatpush1.msra.mxu0 0.0
    %108 = vmatprep.subr.mxu0 0.0
    %109 = vmatpush1.msra.mxu0 0.0
    %110 = vmatprep.subr.mxu0 0.0
    %111 = vmatpush1.msra.mxu0 0.0
    %112 = vmatprep.subr.mxu0 0.0
    %113 = vmatpush1.msra.mxu0 0.0
    %114 = vmatprep.subr.mxu0 0.0
    %115 = vmatpush1.msra.mxu0 0.0
    %116 = vmatprep.subr.mxu0 0.0
    %117 = vmatpush1.msra.mxu0 0.0
    %118 = vmatprep.subr.mxu0 0.0
    %119 = vmatpush1.msra.mxu0 0.0
    %120 = vmatprep.subr.mxu0 0.0
    %121 = vmatpush1.msra.mxu0 0.0
    %122 = vmatprep.subr.mxu0 0.0
    %123 = vmatpush1.msra.mxu0 0.0
    %124 = vmatprep.subr.mxu0 0.0
    %125 = vmatpush1.msra.mxu0 0.0
    %126 = vmatprep.mubr.f32.mxu0 0.0
    %127 = vmatmul.mubr.f32.gmra.mrb[0].mxu0 %v60
    %v128 = vpop.f32.mrb[0].mxu0
    %v129 = vadd.f32 0.0, %v128
    %v130 = vpop.f32.mrb[0].mxu0
    %131 = vdwg.mxu0
    %v132 = vld [vmem:[%s13] sm:$0x3]
    %vm133 = vcmask 15360
    %v135 = vsel %vm133, %v129, 0
    %vm137 = vcmask 1041408
    %v139 = vsel %vm137, %v132, 0
    %141 = vmatprep.subr.mxu0 0.0
    %142 = vmatpush1.msra.mxu0 %v139
    %143 = vmatprep.subr.mxu0 0.0
    %144 = vmatpush1.msra.mxu0 0.0
    %145 = vmatprep.subr.mxu0 0.0
    %146 = vmatpush1.msra.mxu0 0.0
    %147 = vmatprep.subr.mxu0 0.0
    %148 = vmatpush1.msra.mxu0 0.0
    %149 = vmatprep.subr.mxu0 0.0
    %150 = vmatpush1.msra.mxu0 0.0
    %151 = vmatprep.subr.mxu0 0.0
    %152 = vmatpush1.msra.mxu0 0.0
    %153 = vmatprep.subr.mxu0 0.0
    %154 = vmatpush1.msra.mxu0 0.0
    %155 = vmatprep.subr.mxu0 0.0
    %156 = vmatpush1.msra.mxu0 0.0
    %157 = vmatprep.subr.mxu0 0.0
    %158 = vmatpush1.msra.mxu0 0.0
    %159 = vmatprep.subr.mxu0 0.0
    %160 = vmatpush1.msra.mxu0 0.0
    %161 = vmatprep.subr.mxu0 0.0
    %162 = vmatpush1.msra.mxu0 0.0
    %163 = vmatprep.subr.mxu0 0.0
    %164 = vmatpush1.msra.mxu0 0.0
    %165 = vmatprep.subr.mxu0 0.0
    %166 = vmatpush1.msra.mxu0 0.0
    %167 = vmatprep.subr.mxu0 0.0
    %168 = vmatpush1.msra.mxu0 0.0
    %169 = vmatprep.subr.mxu0 0.0
    %170 = vmatpush1.msra.mxu0 0.0
    %171 = vmatprep.subr.mxu0 0.0
    %172 = vmatpush1.msra.mxu0 0.0
    %173 = vmatprep.subr.mxu0 0.0
    %174 = vmatpush1.msra.mxu0 0.0
    %175 = vmatprep.subr.mxu0 0.0
    %176 = vmatpush1.msra.mxu0 0.0
    %177 = vmatprep.subr.mxu0 0.0
    %178 = vmatpush1.msra.mxu0 0.0
    %179 = vmatprep.subr.mxu0 0.0
    %180 = vmatpush1.msra.mxu0 0.0
    %181 = vmatprep.subr.mxu0 0.0
    %182 = vmatpush1.msra.mxu0 0.0
    %183 = vmatprep.subr.mxu0 0.0
    %184 = vmatpush1.msra.mxu0 0.0
    %185 = vmatprep.subr.mxu0 0.0
    %186 = vmatpush1.msra.mxu0 0.0
    %187 = vmatprep.subr.mxu0 0.0
    %188 = vmatpush1.msra.mxu0 0.0
    %189 = vmatprep.subr.mxu0 0.0
    %190 = vmatpush1.msra.mxu0 0.0
    %191 = vmatprep.subr.mxu0 0.0
    %192 = vmatpush1.msra.mxu0 0.0
    %193 = vmatprep.subr.mxu0 0.0
    %194 = vmatpush1.msra.mxu0 0.0
    %195 = vmatprep.subr.mxu0 0.0
    %196 = vmatpush1.msra.mxu0 0.0
    %197 = vmatprep.subr.mxu0 0.0
    %198 = vmatpush1.msra.mxu0 0.0
    %199 = vmatprep.subr.mxu0 0.0
    %200 = vmatpush1.msra.mxu0 0.0
    %201 = vmatprep.subr.mxu0 0.0
    %202 = vmatpush1.msra.mxu0 0.0
    %203 = vmatprep.subr.mxu0 0.0
    %204 = vmatpush1.msra.mxu0 0.0
    %205 = vmatprep.mubr.f32.mxu0 0.0
    %206 = vmatmul.mubr.f32.gmra.mrb[0].mxu0 %v135
    %v207 = vpop.f32.mrb[0].mxu0
    %v208 = vadd.f32 0.0, %v207
    %v209 = vpop.f32.mrb[0].mxu0
    %210 = vdwg.mxu0
    %v211 = vsub.f32 %v49, %v208
    %v212 = vmul.f32 %v211, %v211
    %v214 = vsel %vm58, %v212, 0
    %216 = vmatprep.subr.mxu0 0.0
    %217 = vmatpush1.msra.mxu0 %v50
    %218 = vmatprep.subr.mxu0 0.0
    %219 = vmatpush1.msra.mxu0 %v51
    %220 = vmatprep.subr.mxu0 0.0
    %221 = vmatpush1.msra.mxu0 %v52
    %222 = vmatprep.subr.mxu0 0.0
    %223 = vmatpush1.msra.mxu0 %v53
    %224 = vmatprep.subr.mxu0 0.0
    %225 = vmatpush1.msra.mxu0 %v54
    %226 = vmatprep.subr.mxu0 0.0
    %227 = vmatpush1.msra.mxu0 %v55
    %228 = vmatprep.subr.mxu0 0.0
    %229 = vmatpush1.msra.mxu0 %v56
    %230 = vmatprep.subr.mxu0 0.0
    %231 = vmatpush1.msra.mxu0 %v57
    %232 = vmatprep.subr.mxu0 0.0
    %233 = vmatpush1.msra.mxu0 0.0
    %234 = vmatprep.subr.mxu0 0.0
    %235 = vmatpush1.msra.mxu0 0.0
    %236 = vmatprep.subr.mxu0 0.0
    %237 = vmatpush1.msra.mxu0 0.0
    %238 = vmatprep.subr.mxu0 0.0
    %239 = vmatpush1.msra.mxu0 0.0
    %240 = vmatprep.subr.mxu0 0.0
    %241 = vmatpush1.msra.mxu0 0.0
    %242 = vmatprep.subr.mxu0 0.0
    %243 = vmatpush1.msra.mxu0 0.0
    %244 = vmatprep.subr.mxu0 0.0
    %245 = vmatpush1.msra.mxu0 0.0
    %246 = vmatprep.subr.mxu0 0.0
    %247 = vmatpush1.msra.mxu0 0.0
    %248 = vmatprep.subr.mxu0 0.0
    %249 = vmatpush1.msra.mxu0 0.0
    %250 = vmatprep.subr.mxu0 0.0
    %251 = vmatpush1.msra.mxu0 0.0
    %252 = vmatprep.subr.mxu0 0.0
    %253 = vmatpush1.msra.mxu0 0.0
    %254 = vmatprep.subr.mxu0 0.0
    %255 = vmatpush1.msra.mxu0 0.0
    %256 = vmatprep.subr.mxu0 0.0
    %257 = vmatpush1.msra.mxu0 0.0
    %258 = vmatprep.subr.mxu0 0.0
    %259 = vmatpush1.msra.mxu0 0.0
    %260 = vmatprep.subr.mxu0 0.0
    %261 = vmatpush1.msra.mxu0 0.0
    %262 = vmatprep.subr.mxu0 0.0
    %263 = vmatpush1.msra.mxu0 0.0
    %264 = vmatprep.subr.mxu0 0.0
    %265 = vmatpush1.msra.mxu0 0.0
    %266 = vmatprep.subr.mxu0 0.0
    %267 = vmatpush1.msra.mxu0 0.0
    %268 = vmatprep.subr.mxu0 0.0
    %269 = vmatpush1.msra.mxu0 0.0
    %270 = vmatprep.subr.mxu0 0.0
    %271 = vmatpush1.msra.mxu0 0.0
    %272 = vmatprep.subr.mxu0 0.0
    %273 = vmatpush1.msra.mxu0 0.0
    %274 = vmatprep.subr.mxu0 0.0
    %275 = vmatpush1.msra.mxu0 0.0
    %276 = vmatprep.subr.mxu0 0.0
    %277 = vmatpush1.msra.mxu0 0.0
    %278 = vmatprep.subr.mxu0 0.0
    %279 = vmatpush1.msra.mxu0 0.0
    %280 = vmatprep.mubr.f32.mxu0 0.0
    %281 = vmatmul.mubr.f32.gmra.mrb[0].mxu0 %v214
    %v282 = vpop.f32.mrb[0].mxu0
    %v283 = vadd.f32 0.0, %v282
    %v284 = vpop.f32.mrb[0].mxu0
    %285 = vdwg.mxu0
    %v287 = vsel %vm133, %v283, 0
    %289 = vmatprep.subr.mxu0 0.0
    %290 = vmatpush1.msra.mxu0 %v139
    %291 = vmatprep.subr.mxu0 0.0
    %292 = vmatpush1.msra.mxu0 0.0
    %293 = vmatprep.subr.mxu0 0.0
    %294 = vmatpush1.msra.mxu0 0.0
    %295 = vmatprep.subr.mxu0 0.0
    %296 = vmatpush1.msra.mxu0 0.0
    %297 = vmatprep.subr.mxu0 0.0
    %298 = vmatpush1.msra.mxu0 0.0
    %299 = vmatprep.subr.mxu0 0.0
    %300 = vmatpush1.msra.mxu0 0.0
    %301 = vmatprep.subr.mxu0 0.0
    %302 = vmatpush1.msra.mxu0 0.0
    %303 = vmatprep.subr.mxu0 0.0
    %304 = vmatpush1.msra.mxu0 0.0
    %305 = vmatprep.subr.mxu0 0.0
    %306 = vmatpush1.msra.mxu0 0.0
    %307 = vmatprep.subr.mxu0 0.0
    %308 = vmatpush1.msra.mxu0 0.0
    %309 = vmatprep.subr.mxu0 0.0
    %310 = vmatpush1.msra.mxu0 0.0
    %311 = vmatprep.subr.mxu0 0.0
    %312 = vmatpush1.msra.mxu0 0.0
    %313 = vmatprep.subr.mxu0 0.0
    %314 = vmatpush1.msra.mxu0 0.0
    %315 = vmatprep.subr.mxu0 0.0
    %316 = vmatpush1.msra.mxu0 0.0
    %317 = vmatprep.subr.mxu0 0.0
    %318 = vmatpush1.msra.mxu0 0.0
    %319 = vmatprep.subr.mxu0 0.0
    %320 = vmatpush1.msra.mxu0 0.0
    %321 = vmatprep.subr.mxu0 0.0
    %322 = vmatpush1.msra.mxu0 0.0
    %323 = vmatprep.subr.mxu0 0.0
    %324 = vmatpush1.msra.mxu0 0.0
    %325 = vmatprep.subr.mxu0 0.0
    %326 = vmatpush1.msra.mxu0 0.0
    %327 = vmatprep.subr.mxu0 0.0
    %328 = vmatpush1.msra.mxu0 0.0
    %329 = vmatprep.subr.mxu0 0.0
    %330 = vmatpush1.msra.mxu0 0.0
    %331 = vmatprep.subr.mxu0 0.0
    %332 = vmatpush1.msra.mxu0 0.0
    %333 = vmatprep.subr.mxu0 0.0
    %334 = vmatpush1.msra.mxu0 0.0
    %335 = vmatprep.subr.mxu0 0.0
    %336 = vmatpush1.msra.mxu0 0.0
    %337 = vmatprep.subr.mxu0 0.0
    %338 = vmatpush1.msra.mxu0 0.0
    %339 = vmatprep.subr.mxu0 0.0
    %340 = vmatpush1.msra.mxu0 0.0
    %341 = vmatprep.subr.mxu0 0.0
    %342 = vmatpush1.msra.mxu0 0.0
    %343 = vmatprep.subr.mxu0 0.0
    %344 = vmatpush1.msra.mxu0 0.0
    %345 = vmatprep.subr.mxu0 0.0
    %346 = vmatpush1.msra.mxu0 0.0
    %347 = vmatprep.subr.mxu0 0.0
    %348 = vmatpush1.msra.mxu0 0.0
    %349 = vmatprep.subr.mxu0 0.0
    %350 = vmatpush1.msra.mxu0 0.0
    %351 = vmatprep.subr.mxu0 0.0
    %352 = vmatpush1.msra.mxu0 0.0
    %353 = vmatprep.mubr.f32.mxu0 0.0
    %354 = vmatmul.mubr.f32.gmra.mrb[0].mxu0 %v287
    %v355 = vpop.f32.mrb[0].mxu0
    %v356 = vadd.f32 1e-05, %v355
    %v357 = vpop.f32.mrb[0].mxu0
    %358 = vdwg.mxu0
    %v359 = vrsqrt.pop %v356
    %v360 = vmul.f32 %v211, %v359
    %v361 = vld [vmem:[%s1] sm:$0x1]
    %v363 = vlaneseq
    %v364 = vshrl.u32 %v363, 7
    %v365 = vsub.s32 0, %v364
    %v366 = vrot.slane %v361, %v365
    %v368 = vmul.f32 %v360, %v366
    %v369 = vld [vmem:[%s2] sm:$0x1]
    %v371 = vlaneseq
    %v372 = vshrl.u32 %v371, 7
    %v373 = vsub.s32 0, %v372
    %v374 = vrot.slane %v369, %v373
    %v376 = vadd.f32 %v368, %v374
    %v377 = vpack.c.bf16 %v376, %v376
    %v378 = vsel %vm58, %v376, 0.0
    %v379 = vrot.slane %v378, 4
    %v380 = vadd.f32 %v378, %v379
    %v381 = vrot.slane %v380, 2
    %v382 = vadd.f32 %v380, %v381
    %v383 = vrot.slane %v382, 1
    %v384 = vadd.f32 %v382, %v383
    %v385 = vrcp.pop 8.0
    %v386 = vmul.f32 %v384, %v385
    %388 = vrot.lane.b32.xlu0 %v386, 96
    %v389 = vpop.permute.xlu0 %388
    %vm391 = vcmask 1040384
    %v392 = vsel %vm391, %v386, %v389
    %v393 = vpack.c.bf16 %v392, %v392
    %v394 = vld [vmem:[%s3] sm:$0xf]
    %v395 = vld [vmem:[%s3 + $0x4] sm:$0xf]
    %v396 = vld [vmem:[%s3 + $0x8] sm:$0xf]
    %v397 = vld [vmem:[%s3 + $0xc] sm:$0xf]
    %v398 = vld [vmem:[%s4] sm:$0x1]
    %v400 = vlaneseq
    %v401 = vshrl.u32 %v400, 7
    %v402 = vsub.s32 0, %v401
    %v403 = vrot.slane %v398, %v402
    %v409 = vunpack.c.l.b16 %v394
    %v410 = vunpack.c.l.b16 %v395
    %v411 = vunpack.c.l.b16 %v396
    %v412 = vunpack.c.l.b16 %v397
    %v413 = vpack.c.b16 %v410, %v409
    %v414 = vpack.c.b16 %v412, %v411
    %vm417 = vcmask 261120
    %v419 = vsel %vm417, %v393, 0
    %421 = vmatprep.subr.bf16.mxu0 0
    %422 = vmatpush1.bf16.msra.mxu0 %v413
    %423 = vmatprep.subr.bf16.mxu0 0
    %424 = vmatpush1.bf16.msra.mxu0 %v414
    %425 = vmatprep.subr.bf16.mxu0 0
    %426 = vmatpush1.bf16.msra.mxu0 0
    %427 = vmatprep.subr.bf16.mxu0 0
    %428 = vmatpush1.bf16.msra.mxu0 0
    %429 = vmatprep.subr.bf16.mxu0 0
    %430 = vmatpush1.bf16.msra.mxu0 0
    %431 = vmatprep.subr.bf16.mxu0 0
    %432 = vmatpush1.bf16.msra.mxu0 0
    %433 = vmatprep.subr.bf16.mxu0 0
    %434 = vmatpush1.bf16.msra.mxu0 0
    %435 = vmatprep.subr.bf16.mxu0 0
    %436 = vmatpush1.bf16.msra.mxu0 0
    %437 = vmatprep.subr.bf16.mxu0 0
    %438 = vmatpush1.bf16.msra.mxu0 0
    %439 = vmatprep.subr.bf16.mxu0 0
    %440 = vmatpush1.bf16.msra.mxu0 0
    %441 = vmatprep.subr.bf16.mxu0 0
    %442 = vmatpush1.bf16.msra.mxu0 0
    %443 = vmatprep.subr.bf16.mxu0 0
    %444 = vmatpush1.bf16.msra.mxu0 0
    %445 = vmatprep.subr.bf16.mxu0 0
    %446 = vmatpush1.bf16.msra.mxu0 0
    %447 = vmatprep.subr.bf16.mxu0 0
    %448 = vmatpush1.bf16.msra.mxu0 0
    %449 = vmatprep.subr.bf16.mxu0 0
    %450 = vmatpush1.bf16.msra.mxu0 0
    %451 = vmatprep.subr.bf16.mxu0 0
    %452 = vmatpush1.bf16.msra.mxu0 0
    %453 = vmatprep.mubr.bf16.mxu0 0
    %454 = vmatmul.mubr.bf16.gmra.mrb[0].mxu0 %v419
    %v455 = vpop.f32.mrb[0].mxu0
    %v456 = vadd.f32 %v403, %v455
    %v457 = vpop.f32.mrb[0].mxu0
    %v458 = vpop.f32.mrb[0].mxu0
    %v459 = vpop.f32.mrb[0].mxu0
    %460 = vdwg.mxu0
    %v461 = vmul.f32 %v456, 0.5
    %v462 = vmul.f32 %v456, 0.70710677
    %v463 = verf.f32.pop %v462
    %v464 = vadd.f32 %v463, 1.0
    %v465 = vmul.f32 %v461, %v464
    %v466 = vpack.c.bf16 %v465, %v465
    %v467 = vld [vmem:[%s5] sm:$0xf]
    %v468 = vld [vmem:[%s5 + $0x4] sm:$0xf]
    %v469 = vld [vmem:[%s5 + $0x8] sm:$0xf]
    %v470 = vld [vmem:[%s5 + $0xc] sm:$0xf]
    %v471 = vld [vmem:[%s6] sm:$0x1]
    %v473 = vlaneseq
    %v474 = vshrl.u32 %v473, 7
    %v475 = vsub.s32 0, %v474
    %v476 = vrot.slane %v471, %v475
    %v482 = vunpack.c.l.b16 %v467
    %v483 = vunpack.c.l.b16 %v468
    %v484 = vunpack.c.l.b16 %v469
    %v485 = vunpack.c.l.b16 %v470
    %v486 = vpack.c.b16 %v483, %v482
    %v487 = vpack.c.b16 %v485, %v484
    %v491 = vsel %vm417, %v466, 0
    %493 = vmatprep.subr.bf16.mxu0 0
    %494 = vmatpush1.bf16.msra.mxu0 %v486
    %495 = vmatprep.subr.bf16.mxu0 0
    %496 = vmatpush1.bf16.msra.mxu0 %v487
    %497 = vmatprep.subr.bf16.mxu0 0
    %498 = vmatpush1.bf16.msra.mxu0 0
    %499 = vmatprep.subr.bf16.mxu0 0
    %500 = vmatpush1.bf16.msra.mxu0 0
    %501 = vmatprep.subr.bf16.mxu0 0
    %502 = vmatpush1.bf16.msra.mxu0 0
    %503 = vmatprep.subr.bf16.mxu0 0
    %504 = vmatpush1.bf16.msra.mxu0 0
    %505 = vmatprep.subr.bf16.mxu0 0
    %506 = vmatpush1.bf16.msra.mxu0 0
    %507 = vmatprep.subr.bf16.mxu0 0
    %508 = vmatpush1.bf16.msra.mxu0 0
    %509 = vmatprep.subr.bf16.mxu0 0
    %510 = vmatpush1.bf16.msra.mxu0 0
    %511 = vmatprep.subr.bf16.mxu0 0
    %512 = vmatpush1.bf16.msra.mxu0 0
    %513 = vmatprep.subr.bf16.mxu0 0
    %514 = vmatpush1.bf16.msra.mxu0 0
    %515 = vmatprep.subr.bf16.mxu0 0
    %516 = vmatpush1.bf16.msra.mxu0 0
    %517 = vmatprep.subr.bf16.mxu0 0
    %518 = vmatpush1.bf16.msra.mxu0 0
    %519 = vmatprep.subr.bf16.mxu0 0
    %520 = vmatpush1.bf16.msra.mxu0 0
    %521 = vmatprep.subr.bf16.mxu0 0
    %522 = vmatpush1.bf16.msra.mxu0 0
    %523 = vmatprep.subr.bf16.mxu0 0
    %524 = vmatpush1.bf16.msra.mxu0 0
    %525 = vmatprep.mubr.bf16.mxu0 0
    %526 = vmatmul.mubr.bf16.gmra.mrb[0].mxu0 %v491
    %v527 = vpop.f32.mrb[0].mxu0
    %v528 = vadd.f32 %v476, %v527
    %v529 = vpop.f32.mrb[0].mxu0
    %v530 = vpop.f32.mrb[0].mxu0
    %v531 = vpop.f32.mrb[0].mxu0
    %532 = vdwg.mxu0
    %v533 = vld [vmem:[%s7] sm:$0x1]
    %v534 = vadd.f32 %v528, 1.0
    %v536 = vlaneseq
    %v537 = vshrl.u32 %v536, 7
    %v538 = vsub.s32 0, %v537
    %v539 = vrot.slane %v533, %v538
    %v541 = vmul.f32 %v539, %v534
    %v542 = vld [vmem:[%s8] sm:$0x1]
    %v544 = vlaneseq
    %v545 = vshrl.u32 %v544, 7
    %v546 = vsub.s32 0, %v545
    %v547 = vrot.slane %v542, %v546
    %550 = vrot.lane.b32.xlu0 %v528, 96
    %v551 = vpop.permute.xlu0 %550
    %v553 = vadd.f32 %v547, %v551
    %554 = vxpose.xlu0.b32.start [1/16] %v541, 128
    %555 = vxpose.xlu0.b32.cont [2/16] 0.0, 128
    %556 = vxpose.xlu0.b32.cont [3/16] 0.0, 128
    %557 = vxpose.xlu0.b32.cont [4/16] 0.0, 128
    %558 = vxpose.xlu0.b32.cont [5/16] 0.0, 128
    %559 = vxpose.xlu0.b32.cont [6/16] 0.0, 128
    %560 = vxpose.xlu0.b32.cont [7/16] 0.0, 128
    %561 = vxpose.xlu0.b32.cont [8/16] 0.0, 128
    %562 = vxpose.xlu0.b32.cont [9/16] 0.0, 128
    %563 = vxpose.xlu0.b32.cont [10/16] 0.0, 128
    %564 = vxpose.xlu0.b32.cont [11/16] 0.0, 128
    %565 = vxpose.xlu0.b32.cont [12/16] 0.0, 128
    %566 = vxpose.xlu0.b32.cont [13/16] 0.0, 128
    %567 = vxpose.xlu0.b32.cont [14/16] 0.0, 128
    %568 = vxpose.xlu0.b32.cont [15/16] 0.0, 128
    %569 = vxpose.xlu0.b32.end [16/16] 0.0, 128
    %v570 = vpop.trf.xlu0
    %v571 = vpop.trf.xlu0
    %v572 = vpop.trf.xlu0
    %v573 = vpop.trf.xlu0
    %v574 = vpop.trf.xlu0
    %v575 = vpop.trf.xlu0
    %v576 = vpop.trf.xlu0
    %v577 = vpop.trf.xlu0
    %v578 = vpop.trf.xlu0
    %v579 = vpop.trf.xlu0
    %v580 = vpop.trf.xlu0
    %v581 = vpop.trf.xlu0
    %v582 = vpop.trf.xlu0
    %v583 = vpop.trf.xlu0
    %v584 = vpop.trf.xlu0
    %v585 = vpop.trf.xlu0
    %586 = vxpose.xlu0.b32.start [1/16] %v553, 128
    %587 = vxpose.xlu0.b32.cont [2/16] 0.0, 128
    %588 = vxpose.xlu0.b32.cont [3/16] 0.0, 128
    %589 = vxpose.xlu0.b32.cont [4/16] 0.0, 128
    %590 = vxpose.xlu0.b32.cont [5/16] 0.0, 128
    %591 = vxpose.xlu0.b32.cont [6/16] 0.0, 128
    %592 = vxpose.xlu0.b32.cont [7/16] 0.0, 128
    %593 = vxpose.xlu0.b32.cont [8/16] 0.0, 128
    %594 = vxpose.xlu0.b32.cont [9/16] 0.0, 128
    %595 = vxpose.xlu0.b32.cont [10/16] 0.0, 128
    %596 = vxpose.xlu0.b32.cont [11/16] 0.0, 128
    %597 = vxpose.xlu0.b32.cont [12/16] 0.0, 128
    %598 = vxpose.xlu0.b32.cont [13/16] 0.0, 128
    %599 = vxpose.xlu0.b32.cont [14/16] 0.0, 128
    %600 = vxpose.xlu0.b32.cont [15/16] 0.0, 128
    %601 = vxpose.xlu0.b32.end [16/16] 0.0, 128
    %v602 = vpop.trf.xlu0
    %v603 = vpop.trf.xlu0
    %v604 = vpop.trf.xlu0
    %v605 = vpop.trf.xlu0
    %v606 = vpop.trf.xlu0
    %v607 = vpop.trf.xlu0
    %v608 = vpop.trf.xlu0
    %v609 = vpop.trf.xlu0
    %v610 = vpop.trf.xlu0
    %v611 = vpop.trf.xlu0
    %v612 = vpop.trf.xlu0
    %v613 = vpop.trf.xlu0
    %v614 = vpop.trf.xlu0
    %v615 = vpop.trf.xlu0
    %v616 = vpop.trf.xlu0
    %v617 = vpop.trf.xlu0
    %619 = vrot.lane.b32.xlu0 %v571, 2
    %v620 = vpop.permute.xlu0 %619
    %623 = vrot.lane.b32.xlu0 %v572, 4
    %v624 = vpop.permute.xlu0 %623
    %627 = vrot.lane.b32.xlu0 %v573, 6
    %v628 = vpop.permute.xlu0 %627
    %v630 = vsel %vm133, %v570, %v620
    %vm631 = vcmask 31744
    %v632 = vsel %vm631, %v630, %v624
    %vm633 = vcmask 48128
    %v634 = vsel %vm633, %v632, %v628
    %636 = vrot.lane.b32.xlu0 %v603, 2
    %v637 = vpop.permute.xlu0 %636
    %640 = vrot.lane.b32.xlu0 %v604, 4
    %v641 = vpop.permute.xlu0 %640
    %644 = vrot.lane.b32.xlu0 %v605, 6
    %v645 = vpop.permute.xlu0 %644
    %v647 = vsel %vm133, %v602, %v637
    %v648 = vsel %vm631, %v647, %v641
    %v649 = vsel %vm633, %v648, %v645
    %v650 = vld [vmem:[%s11] sm:$0xff]
    %vm651 = vcmask 64512
    %v653 = vsel %vm651, %v634, 0
    %655 = vmatprep.subr.mxu0 0.0
    %656 = vmatpush1.msra.mxu0 %v650
    %657 = vmatprep.subr.mxu0 0.0
    %658 = vmatpush1.msra.mxu0 0.0
    %659 = vmatprep.subr.mxu0 0.0
    %660 = vmatpush1.msra.mxu0 0.0
    %661 = vmatprep.subr.mxu0 0.0
    %662 = vmatpush1.msra.mxu0 0.0
    %663 = vmatprep.subr.mxu0 0.0
    %664 = vmatpush1.msra.mxu0 0.0
    %665 = vmatprep.subr.mxu0 0.0
    %666 = vmatpush1.msra.mxu0 0.0
    %667 = vmatprep.subr.mxu0 0.0
    %668 = vmatpush1.msra.mxu0 0.0
    %669 = vmatprep.subr.mxu0 0.0
    %670 = vmatpush1.msra.mxu0 0.0
    %671 = vmatprep.subr.mxu0 0.0
    %672 = vmatpush1.msra.mxu0 0.0
    %673 = vmatprep.subr.mxu0 0.0
    %674 = vmatpush1.msra.mxu0 0.0
    %675 = vmatprep.subr.mxu0 0.0
    %676 = vmatpush1.msra.mxu0 0.0
    %677 = vmatprep.subr.mxu0 0.0
    %678 = vmatpush1.msra.mxu0 0.0
    %679 = vmatprep.subr.mxu0 0.0
    %680 = vmatpush1.msra.mxu0 0.0
    %681 = vmatprep.subr.mxu0 0.0
    %682 = vmatpush1.msra.mxu0 0.0
    %683 = vmatprep.subr.mxu0 0.0
    %684 = vmatpush1.msra.mxu0 0.0
    %685 = vmatprep.subr.mxu0 0.0
    %686 = vmatpush1.msra.mxu0 0.0
    %687 = vmatprep.subr.mxu0 0.0
    %688 = vmatpush1.msra.mxu0 0.0
    %689 = vmatprep.subr.mxu0 0.0
    %690 = vmatpush1.msra.mxu0 0.0
    %691 = vmatprep.subr.mxu0 0.0
    %692 = vmatpush1.msra.mxu0 0.0
    %693 = vmatprep.subr.mxu0 0.0
    %694 = vmatpush1.msra.mxu0 0.0
    %695 = vmatprep.subr.mxu0 0.0
    %696 = vmatpush1.msra.mxu0 0.0
    %697 = vmatprep.subr.mxu0 0.0
    %698 = vmatpush1.msra.mxu0 0.0
    %699 = vmatprep.subr.mxu0 0.0
    %700 = vmatpush1.msra.mxu0 0.0
    %701 = vmatprep.subr.mxu0 0.0
    %702 = vmatpush1.msra.mxu0 0.0
    %703 = vmatprep.subr.mxu0 0.0
    %704 = vmatpush1.msra.mxu0 0.0
    %705 = vmatprep.subr.mxu0 0.0
    %706 = vmatpush1.msra.mxu0 0.0
    %707 = vmatprep.subr.mxu0 0.0
    %708 = vmatpush1.msra.mxu0 0.0
    %709 = vmatprep.subr.mxu0 0.0
    %710 = vmatpush1.msra.mxu0 0.0
    %711 = vmatprep.subr.mxu0 0.0
    %712 = vmatpush1.msra.mxu0 0.0
    %713 = vmatprep.subr.mxu0 0.0
    %714 = vmatpush1.msra.mxu0 0.0
    %715 = vmatprep.subr.mxu0 0.0
    %716 = vmatpush1.msra.mxu0 0.0
    %717 = vmatprep.subr.mxu0 0.0
    %718 = vmatpush1.msra.mxu0 0.0
    %719 = vmatprep.mubr.f32.mxu0 0.0
    %720 = vmatmul.mubr.f32.gmra.mrb[0].mxu0 %v653
    %v721 = vpop.f32.mrb[0].mxu0
    %v722 = vadd.f32 0.0, %v721
    %v723 = vpop.f32.mrb[0].mxu0
    %724 = vdwg.mxu0
    %v726 = vsel %vm651, %v649, 0
    %728 = vmatprep.subr.mxu0 0.0
    %729 = vmatpush1.msra.mxu0 %v650
    %730 = vmatprep.subr.mxu0 0.0
    %731 = vmatpush1.msra.mxu0 0.0
    %732 = vmatprep.subr.mxu0 0.0
    %733 = vmatpush1.msra.mxu0 0.0
    %734 = vmatprep.subr.mxu0 0.0
    %735 = vmatpush1.msra.mxu0 0.0
    %736 = vmatprep.subr.mxu0 0.0
    %737 = vmatpush1.msra.mxu0 0.0
    %738 = vmatprep.subr.mxu0 0.0
    %739 = vmatpush1.msra.mxu0 0.0
    %740 = vmatprep.subr.mxu0 0.0
    %741 = vmatpush1.msra.mxu0 0.0
    %742 = vmatprep.subr.mxu0 0.0
    %743 = vmatpush1.msra.mxu0 0.0
    %744 = vmatprep.subr.mxu0 0.0
    %745 = vmatpush1.msra.mxu0 0.0
    %746 = vmatprep.subr.mxu0 0.0
    %747 = vmatpush1.msra.mxu0 0.0
    %748 = vmatprep.subr.mxu0 0.0
    %749 = vmatpush1.msra.mxu0 0.0
    %750 = vmatprep.subr.mxu0 0.0
    %751 = vmatpush1.msra.mxu0 0.0
    %752 = vmatprep.subr.mxu0 0.0
    %753 = vmatpush1.msra.mxu0 0.0
    %754 = vmatprep.subr.mxu0 0.0
    %755 = vmatpush1.msra.mxu0 0.0
    %756 = vmatprep.subr.mxu0 0.0
    %757 = vmatpush1.msra.mxu0 0.0
    %758 = vmatprep.subr.mxu0 0.0
    %759 = vmatpush1.msra.mxu0 0.0
    %760 = vmatprep.subr.mxu0 0.0
    %761 = vmatpush1.msra.mxu0 0.0
    %762 = vmatprep.subr.mxu0 0.0
    %763 = vmatpush1.msra.mxu0 0.0
    %764 = vmatprep.subr.mxu0 0.0
    %765 = vmatpush1.msra.mxu0 0.0
    %766 = vmatprep.subr.mxu0 0.0
    %767 = vmatpush1.msra.mxu0 0.0
    %768 = vmatprep.subr.mxu0 0.0
    %769 = vmatpush1.msra.mxu0 0.0
    %770 = vmatprep.subr.mxu0 0.0
    %771 = vmatpush1.msra.mxu0 0.0
    %772 = vmatprep.subr.mxu0 0.0
    %773 = vmatpush1.msra.mxu0 0.0
    %774 = vmatprep.subr.mxu0 0.0
    %775 = vmatpush1.msra.mxu0 0.0
    %776 = vmatprep.subr.mxu0 0.0
    %777 = vmatpush1.msra.mxu0 0.0
    %778 = vmatprep.subr.mxu0 0.0
    %779 = vmatpush1.msra.mxu0 0.0
    %780 = vmatprep.subr.mxu0 0.0
    %781 = vmatpush1.msra.mxu0 0.0
    %782 = vmatprep.subr.mxu0 0.0
    %783 = vmatpush1.msra.mxu0 0.0
    %784 = vmatprep.subr.mxu0 0.0
    %785 = vmatpush1.msra.mxu0 0.0
    %786 = vmatprep.subr.mxu0 0.0
    %787 = vmatpush1.msra.mxu0 0.0
    %788 = vmatprep.subr.mxu0 0.0
    %789 = vmatpush1.msra.mxu0 0.0
    %790 = vmatprep.subr.mxu0 0.0
    %791 = vmatpush1.msra.mxu0 0.0
    %792 = vmatprep.mubr.f32.mxu0 0.0
    %793 = vmatmul.mubr.f32.gmra.mrb[0].mxu0 %v726
    %v794 = vpop.f32.mrb[0].mxu0
    %v795 = vadd.f32 0.0, %v794
    %v796 = vpop.f32.mrb[0].mxu0
    %797 = vdwg.mxu0
    %v798 = vld [vmem:[%s9] sm:$0xf]
    %v799 = vld [vmem:[%s9 + $0x4] sm:$0xf]
    %v802 = vunpack.c.l.b16 %v798
    %v803 = vunpack.c.l.b16 %v799
    %v804 = vpack.c.b16 %v803, %v802
    %v806 = vsel %vm651, %v804, 0
    %vm808 = vcmask 1043456
    %v810 = vsel %vm808, %v377, 0
    %812 = vmatprep.subr.bf16.mxu0 0
    %813 = vmatpush1.bf16.msra.mxu0 %v810
    %814 = vmatprep.subr.bf16.mxu0 0
    %815 = vmatpush1.bf16.msra.mxu0 0
    %816 = vmatprep.subr.bf16.mxu0 0
    %817 = vmatpush1.bf16.msra.mxu0 0
    %818 = vmatprep.subr.bf16.mxu0 0
    %819 = vmatpush1.bf16.msra.mxu0 0
    %820 = vmatprep.subr.bf16.mxu0 0
    %821 = vmatpush1.bf16.msra.mxu0 0
    %822 = vmatprep.subr.bf16.mxu0 0
    %823 = vmatpush1.bf16.msra.mxu0 0
    %824 = vmatprep.subr.bf16.mxu0 0
    %825 = vmatpush1.bf16.msra.mxu0 0
    %826 = vmatprep.subr.bf16.mxu0 0
    %827 = vmatpush1.bf16.msra.mxu0 0
    %828 = vmatprep.subr.bf16.mxu0 0
    %829 = vmatpush1.bf16.msra.mxu0 0
    %830 = vmatprep.subr.bf16.mxu0 0
    %831 = vmatpush1.bf16.msra.mxu0 0
    %832 = vmatprep.subr.bf16.mxu0 0
    %833 = vmatpush1.bf16.msra.mxu0 0
    %834 = vmatprep.subr.bf16.mxu0 0
    %835 = vmatpush1.bf16.msra.mxu0 0
    %836 = vmatprep.subr.bf16.mxu0 0
    %837 = vmatpush1.bf16.msra.mxu0 0
    %838 = vmatprep.subr.bf16.mxu0 0
    %839 = vmatpush1.bf16.msra.mxu0 0
    %840 = vmatprep.subr.bf16.mxu0 0
    %841 = vmatpush1.bf16.msra.mxu0 0
    %842 = vmatprep.subr.bf16.mxu0 0
    %843 = vmatpush1.bf16.msra.mxu0 0
    %844 = vmatprep.mubr.bf16.mxu0 0
    %845 = vmatmul.mubr.bf16.gmra.mrb[0].mxu0 %v806
    %v846 = vpop.f32.mrb[0].mxu0
    %v847 = vadd.f32 0.0, %v846
    %v848 = vpop.f32.mrb[0].mxu0
    %v849 = vpop.f32.mrb[0].mxu0
    %v850 = vadd.f32 0.0, %v849
    %v851 = vpop.f32.mrb[0].mxu0
    %852 = vdwg.mxu0
    %v853 = vmul.f32 %v847, %v722
    %v854 = vadd.f32 %v853, %v795
    %v855 = vmul.f32 %v850, %v722
    %v856 = vmul.f32 %v854, %v854
    %v857 = vmul.f32 %v855, %v855
    %v858 = vadd.f32 %v856, %v857
    %v859 = vrsqrt.pop %v858
    %v860 = vmul.f32 %v858, %v859
    %vm861 = vcmp.eq.f32.partialorder %v858, inf
    %v862 = vsel %vm861, %v858, %v860
    %vm863 = vcmp.eq.f32.partialorder %v858, 0.0
    %v864 = vand.u32 %v858, 2147483648
    %v865 = vsel %vm863, %v864, %v862
    %v866 = vmul.f32 %v865, 0.5
    %v867 = vmul.f32 %v865, 0.044715
    %v868 = vmul.f32 %v867, %v865
    %v869 = vmul.f32 %v868, %v865
    %v870 = vadd.f32 %v865, %v869
    %v871 = vmul.f32 %v870, 0.7978846
    %v872 = vtanh.pop %v871
    %v873 = vadd.f32 %v872, 1.0
    %v874 = vmul.f32 %v866, %v873
    %v875 = vadd.f32 %v865, 1e-06
    %v876 = vrcp.pop %v875
    %v877 = vmul.f32 %v874, %v876
    %v878 = vmul.f32 %v854, %v877
    %v879 = vpack.c.bf16 %v878, %v878
    %v880 = vmul.f32 %v855, %v877
    %v881 = vpack.c.bf16 %v880, %v880
    %v883 = vrot.slane %v881, 4
    %v886 = vsel %vm808, %v879, %v883
    %v888 = vld [vmem:[%s10] sm:$0xf]
    %vm889 = vcmask 130048
    %v891 = vsel %vm889, %v888, 0
    %893 = vmatprep.subr.bf16.mxu0 0
    %894 = vmatpush1.bf16.msra.mxu0 %v886
    %895 = vmatprep.subr.bf16.mxu0 0
    %896 = vmatpush1.bf16.msra.mxu0 0
    %897 = vmatprep.subr.bf16.mxu0 0
    %898 = vmatpush1.bf16.msra.mxu0 0
    %899 = vmatprep.subr.bf16.mxu0 0
    %900 = vmatpush1.bf16.msra.mxu0 0
    %901 = vmatprep.subr.bf16.mxu0 0
    %902 = vmatpush1.bf16.msra.mxu0 0
    %903 = vmatprep.subr.bf16.mxu0 0
    %904 = vmatpush1.bf16.msra.mxu0 0
    %905 = vmatprep.subr.bf16.mxu0 0
    %906 = vmatpush1.bf16.msra.mxu0 0
    %907 = vmatprep.subr.bf16.mxu0 0
    %908 = vmatpush1.bf16.msra.mxu0 0
    %909 = vmatprep.subr.bf16.mxu0 0
    %910 = vmatpush1.bf16.msra.mxu0 0
    %911 = vmatprep.subr.bf16.mxu0 0
    %912 = vmatpush1.bf16.msra.mxu0 0
    %913 = vmatprep.subr.bf16.mxu0 0
    %914 = vmatpush1.bf16.msra.mxu0 0
    %915 = vmatprep.subr.bf16.mxu0 0
    %916 = vmatpush1.bf16.msra.mxu0 0
    %917 = vmatprep.subr.bf16.mxu0 0
    %918 = vmatpush1.bf16.msra.mxu0 0
    %919 = vmatprep.subr.bf16.mxu0 0
    %920 = vmatpush1.bf16.msra.mxu0 0
    %921 = vmatprep.subr.bf16.mxu0 0
    %922 = vmatpush1.bf16.msra.mxu0 0
    %923 = vmatprep.subr.bf16.mxu0 0
    %924 = vmatpush1.bf16.msra.mxu0 0
    %925 = vmatprep.mubr.bf16.mxu0 0
    %926 = vmatmul.mubr.bf16.gmra.mrb[0].mxu0 %v891
    %v927 = vpop.f32.mrb[0].mxu0
    %v928 = vadd.f32 0.0, %v927
    %v929 = vpop.f32.mrb[0].mxu0
    %v930 = vpop.f32.mrb[0].mxu0
    %v931 = vpop.f32.mrb[0].mxu0
    %932 = vdwg.mxu0
    %v933 = vadd.f32 %v49, %v928
    %934 = vst.msk [vmem:[#allocation2] sm:$0xff] %vm58, %v933
    // Predicated region
    $region58: #{tpu_custom_call.1} parent=1 // pred_check
      _
    $region59: #{tpu_custom_call.1} parent=1 // pred_check_branch
      %936 = sbr.rel (0) target = $region61
    $region60: #{tpu_custom_call.1} parent=1 // pred_region
      %s938 = ssub.s32 128, 128
      %939 = vsyncadd [#allocation3], %s938
      %s941 = sshll.u32 [#allocation2], 4
      %s942 = int_to_ptr.vmem [resolvable:$true] %s941
      %944 = dma.vmem_to_hbm [thread:$0]  %s942, 128, %s14, [#allocation3]
    $region61: #{tpu_custom_call.1} parent=1 // pred_fallthru
      _
    // Predicated region
    $region62: #{tpu_custom_call.1} parent=1 // pred_check
      _
    $region63: #{tpu_custom_call.1} parent=1 // pred_check_branch
      %946 = sbr.rel (0) target = $region65
    $region64: #{tpu_custom_call.1} parent=1 // pred_region
      %947 = dma.done [#allocation3], 128
    $region65: #{tpu_custom_call.1} parent=1 // pred_fallthru
      _
    %948 = vsyncpa [#allocation3], 1

</llo_original>
